<compile_context>
chip_gen: v7x
topology: tpu7x:2x2x1
jax: 0.10.0
libtpu: 0.0.40
codegen_flags: <defaults>
</compile_context>

<pallas_src>
import jax
import jax.numpy as jnp
from jax import lax
from jax.experimental import pallas as pl
from jax.experimental.pallas import tpu as pltpu

# Model hyper-parameters (from the PyTorch module)
EMBEDDING_SIZE = 10
HIDDEN_SIZE = 8
INPUT_SIZE = 4          # vocab size
NUM_CLASS = 4
NUM_LAYERS = 2          # realized as two explicit RNN layers below

# Packed-parameter row layout ([PACK_ROWS, HIDDEN_SIZE] f32). Weight segments are
# 8-sublane aligned; the three single-row biases share the last segment.
_R_W0, _R_WHH0, _R_WIH1, _R_WHH1, _R_WFC = 0, 8, 16, 24, 32
_R_B0, _R_B1, _R_BFC = 40, 41, 42
PACK_ROWS = 48


def pack_params(p):
    """One-time fold + pack (cached across forward calls).

    Folds:  w0 = emb_w @ W_ih0   (embedding folded into layer-0 input projection)
            b0 = b_ih0 + b_hh0,  b1 = b_ih1 + b_hh1
    Packs everything into a single [48, 8] f32 buffer -> a single prologue DMA.
    """
    H, C = HIDDEN_SIZE, NUM_CLASS
    w0 = jnp.dot(p["emb_w"], p["wih0"], precision=jax.lax.Precision.HIGHEST)   # [V, H]
    b0 = (p["bih0"] + p["bhh0"])[0]                                            # [H]
    b1 = (p["bih1"] + p["bhh1"])[0]                                            # [H]
    buf = jnp.zeros((PACK_ROWS, H), jnp.float32)
    buf = buf.at[_R_W0:_R_W0 + INPUT_SIZE, :].set(w0)
    buf = buf.at[_R_WHH0:_R_WHH0 + H, :].set(p["whh0"])
    buf = buf.at[_R_WIH1:_R_WIH1 + H, :].set(p["wih1"])
    buf = buf.at[_R_WHH1:_R_WHH1 + H, :].set(p["whh1"])
    buf = buf.at[_R_WFC:_R_WFC + H, :C].set(p["wfc"])     # cols >= C stay zero
    buf = buf.at[_R_B0, :].set(b0)
    buf = buf.at[_R_B1, :].set(b1)
    buf = buf.at[_R_BFC, :C].set(p["bfc"][0])             # cols >= C stay zero
    return buf


def rnn_emb_kernel(idx_ref,      # [B*S, 1] int32 token ids, TIME-major (row n = t*B + b)
                   par_ref,      # [48, 8]  packed/folded parameters
                   out_ref,      # [B*S, C] batch-first flat logits
                   h_sc):        # VMEM scratch [B, S, H] for the deferred FC input
    B, S, H = h_sc.shape
    V, C = INPUT_SIZE, NUM_CLASS
    N = B * S
    f32 = jnp.float32

    # ---- static views of the packed parameter buffer (free ref slices) ----------
    w0   = par_ref[_R_W0:_R_W0 + V, :]             # [V, H]  emb folded with W_ih0
    whh0 = par_ref[_R_WHH0:_R_WHH0 + H, :]         # [H, H]
    wih1 = par_ref[_R_WIH1:_R_WIH1 + H, :]         # [H, H]
    whh1 = par_ref[_R_WHH1:_R_WHH1 + H, :]         # [H, H]
    wfc  = par_ref[_R_WFC:_R_WFC + H, :]           # [H, H]  (cols >= C are zero)
    b0   = par_ref[_R_B0:_R_B0 + 1, :]             # [1, H]  b_ih0 + b_hh0
    b1   = par_ref[_R_B1:_R_B1 + 1, :]             # [1, H]  b_ih1 + b_hh1
    bfc  = par_ref[_R_BFC:_R_BFC + 1, :]           # [1, H]  (cols >= C are zero)

    # ---- hoisted input projection (time-major): ONE matmul for every (t, b) -----
    onehot = (idx_ref[...] ==
              lax.broadcasted_iota(jnp.int32, (N, V), 1)).astype(f32)         # [N, V]
    xproj = jnp.dot(onehot, w0, preferred_element_type=f32) + b0              # [N, H]
    xs = [xproj[t * B:(t + 1) * B, :] for t in range(S)]    # contiguous 2-sublane slices

    # ---- wavefront recurrence: layer-1 @ (t-1) runs alongside layer-0 @ t -------
    # initial hidden states are zero (torch.zeros(num_layers, B, H))
    h0 = jnp.tanh(xs[0])                                     # h0 at t = 0
    h1 = None                                                # h1 at t-2 (none yet)
    for t in range(1, S):                                    # static unroll (S is constant)
        # layer 0 at step t  (independent of the layer-1 update below)
        h0_next = jnp.tanh(xs[t] + jnp.dot(h0, whh0, preferred_element_type=f32))
        # layer 1 at step t-1 (uses h0_{t-1}=h0 and h1_{t-2}=h1; no lane concat)
        pre1 = jnp.dot(h0, wih1, preferred_element_type=f32) + b1
        if h1 is not None:
            pre1 = pre1 + jnp.dot(h1, whh1, preferred_element_type=f32)
        h1 = jnp.tanh(pre1)
        h_sc[:, t - 1, :] = h1                               # sink, off the serial chain
        h0 = h0_next
    # tail: layer 1 at the last step
    pre1 = jnp.dot(h0, wih1, preferred_element_type=f32) + b1
    if h1 is not None:
        pre1 = pre1 + jnp.dot(h1, whh1, preferred_element_type=f32)
    h1 = jnp.tanh(pre1)
    h_sc[:, S - 1, :] = h1

    # ---- deferred final Linear: one matmul + one batch-first store --------------
    h_all = h_sc[...].reshape(N, H)                          # [B*S, H], batch-first rows
    logits = jnp.dot(h_all, wfc, preferred_element_type=f32) + bfc            # [N, H]
    out_ref[...] = logits[:, :C].astype(out_ref.dtype)


def model_forward(x_idx, packed_params):
    """x_idx: int32 [B, S] token ids; packed_params: [48, 8] from pack_params.
    Returns float32 [B*S, NUM_CLASS] (== x.view(-1, num_class) in the PyTorch module)."""
    B, S = x_idx.shape
    # time-major flat ids (row n = t*B + b): every in-kernel per-step slice becomes a
    # contiguous 2-sublane window. 64 bytes of reordering, done once by XLA.
    idx_tm = x_idx.astype(jnp.int32).T.reshape(S * B, 1)

    vmem = pl.BlockSpec(memory_space=pltpu.MemorySpace.VMEM)
    # Grid-less single-TensorCore call: the whole problem is a few KiB and latency-bound.
    # TODO(synk): for large B/S add a batch grid axis with dimension_semantics=("parallel",).
    return pl.pallas_call(
        rnn_emb_kernel,
        out_shape=jax.ShapeDtypeStruct((B * S, NUM_CLASS), jnp.float32),
        in_specs=[vmem, vmem],
        out_specs=vmem,
        scratch_shapes=[pltpu.VMEM((B, S, HIDDEN_SIZE), jnp.float32)],
    )(idx_tm, packed_params)


def init_params(key):
    ks = jax.random.split(key, 12)
    u = lambda k, shape, scale: jax.random.uniform(k, shape, jnp.float32, -scale, scale)
    sH = 1.0 / (HIDDEN_SIZE ** 0.5)
    return {
        "emb_w": jax.random.normal(ks[0], (INPUT_SIZE, EMBEDDING_SIZE), jnp.float32),
        # layer 0 (input E -> hidden H), stored as [in, out]
        "wih0": u(ks[1], (EMBEDDING_SIZE, HIDDEN_SIZE), sH),
        "whh0": u(ks[2], (HIDDEN_SIZE, HIDDEN_SIZE), sH),
        "bih0": u(ks[3], (1, HIDDEN_SIZE), sH),
        "bhh0": u(ks[4], (1, HIDDEN_SIZE), sH),
        # layer 1 (hidden H -> hidden H)
        "wih1": u(ks[5], (HIDDEN_SIZE, HIDDEN_SIZE), sH),
        "whh1": u(ks[6], (HIDDEN_SIZE, HIDDEN_SIZE), sH),
        "bih1": u(ks[7], (1, HIDDEN_SIZE), sH),
        "bhh1": u(ks[8], (1, HIDDEN_SIZE), sH),
        # fc (H -> C)
        "wfc": u(ks[9], (HIDDEN_SIZE, NUM_CLASS), sH),
        "bfc": u(ks[10], (1, NUM_CLASS), sH),
    }


def reference_forward(x_idx, p):
    """Pure-JAX reference mirroring the PyTorch forward, for correctness check."""
    B, S = x_idx.shape
    emb = p["emb_w"][x_idx]                                       # [B, S, E]
    h0 = jnp.zeros((B, HIDDEN_SIZE), jnp.float32)
    h1 = jnp.zeros((B, HIDDEN_SIZE), jnp.float32)
    outs = []
    for t in range(S):
        xt = emb[:, t, :]
        h0 = jnp.tanh(xt @ p["wih0"] + p["bih0"] + h0 @ p["whh0"] + p["bhh0"])
        h1 = jnp.tanh(h0 @ p["wih1"] + p["bih1"] + h1 @ p["whh1"] + p["bhh1"])
        outs.append(h1 @ p["wfc"] + p["bfc"])
    out = jnp.stack(outs, axis=1)                                 # [B, S, C]
    return out.reshape(B * S, NUM_CLASS)


if __name__ == "__main__":
    key = jax.random.PRNGKey(0)
    k_param, k_data = jax.random.split(key)

    params = init_params(k_param)
    packed = pack_params(params)          # one-time fold + pack, reused across calls

    batch, seq = 2, 8
    x_idx = jax.random.randint(k_data, (batch, seq), 0, INPUT_SIZE, dtype=jnp.int32)

    out = model_forward(x_idx, packed)
    out = jax.block_until_ready(out)

    ref = reference_forward(x_idx, params)
    assert out.shape == (batch * seq, NUM_CLASS)
    assert jnp.allclose(out, ref, atol=1e-5, rtol=1e-5)

    print("KERNEL_OK")
</pallas_src>

<mosaic_0001>
module attributes {stable_mosaic.version = 11 : i64} {
  func.func @rnn_emb_kernel(%arg0: memref<16x1xi32, #tpu.memory_space<vmem>>, %arg1: memref<48x8xf32, #tpu.memory_space<vmem>>, %arg2: memref<16x4xf32, #tpu.memory_space<vmem>>, %arg3: memref<2x8x8xf32, #tpu.memory_space<vmem>>) attributes {dimension_semantics = [], scalar_prefetch = 0 : i64, scratch_operands = 1 : i64, tpu.core_type = #tpu.core_type<tc>} {
    %c0 = arith.constant 0 : index
    %c0_0 = arith.constant 0 : index
    %0 = vector.load %arg1[%c0, %c0_0] : memref<48x8xf32, #tpu.memory_space<vmem>>, vector<4x8xf32>
    %c8 = arith.constant 8 : index
    %c0_1 = arith.constant 0 : index
    %1 = vector.load %arg1[%c8, %c0_1] : memref<48x8xf32, #tpu.memory_space<vmem>>, vector<8x8xf32>
    %c16 = arith.constant 16 : index
    %c0_2 = arith.constant 0 : index
    %2 = vector.load %arg1[%c16, %c0_2] : memref<48x8xf32, #tpu.memory_space<vmem>>, vector<8x8xf32>
    %c24 = arith.constant 24 : index
    %c0_3 = arith.constant 0 : index
    %3 = vector.load %arg1[%c24, %c0_3] : memref<48x8xf32, #tpu.memory_space<vmem>>, vector<8x8xf32>
    %c32 = arith.constant 32 : index
    %c0_4 = arith.constant 0 : index
    %4 = vector.load %arg1[%c32, %c0_4] : memref<48x8xf32, #tpu.memory_space<vmem>>, vector<8x8xf32>
    %c40 = arith.constant 40 : index
    %c0_5 = arith.constant 0 : index
    %5 = vector.load %arg1[%c40, %c0_5] : memref<48x8xf32, #tpu.memory_space<vmem>>, vector<1x8xf32>
    %c41 = arith.constant 41 : index
    %c0_6 = arith.constant 0 : index
    %6 = vector.load %arg1[%c41, %c0_6] : memref<48x8xf32, #tpu.memory_space<vmem>>, vector<1x8xf32>
    %c42 = arith.constant 42 : index
    %c0_7 = arith.constant 0 : index
    %7 = vector.load %arg1[%c42, %c0_7] : memref<48x8xf32, #tpu.memory_space<vmem>>, vector<1x8xf32>
    %c0_8 = arith.constant 0 : index
    %c0_9 = arith.constant 0 : index
    %8 = vector.load %arg0[%c0_8, %c0_9] : memref<16x1xi32, #tpu.memory_space<vmem>>, vector<16x1xi32>
    %9 = tpu.iota {dimensions = array<i32: 1>} : vector<16x4xi32>
    %10 = vector.broadcast %8 : vector<16x1xi32> to vector<16x4xi32>
    %11 = arith.cmpi eq, %10, %9 : vector<16x4xi32>
    %12 = arith.extui %11 : vector<16x4xi1> to vector<16x4xi32>
    %13 = arith.sitofp %12 : vector<16x4xi32> to vector<16x4xf32>
    %cst = arith.constant dense<0.000000e+00> : vector<16x8xf32>
    %14 = tpu.matmul %13, %0, %cst {dimension_numbers = #tpu.dot_dimension_numbers<[1], [0], [0], [1], [0, 0, 1, 1], [], []>} : vector<16x4xf32>, vector<4x8xf32>, vector<16x8xf32> -> vector<16x8xf32>
    %15 = vector.broadcast %5 : vector<1x8xf32> to vector<16x8xf32>
    %16 = arith.addf %14, %15 : vector<16x8xf32>
    %17 = vector.extract_strided_slice %16 {offsets = [0, 0], sizes = [2, 8], strides = [1, 1]} : vector<16x8xf32> to vector<2x8xf32>
    %18 = vector.extract_strided_slice %16 {offsets = [2, 0], sizes = [2, 8], strides = [1, 1]} : vector<16x8xf32> to vector<2x8xf32>
    %19 = vector.extract_strided_slice %16 {offsets = [4, 0], sizes = [2, 8], strides = [1, 1]} : vector<16x8xf32> to vector<2x8xf32>
    %20 = vector.extract_strided_slice %16 {offsets = [6, 0], sizes = [2, 8], strides = [1, 1]} : vector<16x8xf32> to vector<2x8xf32>
    %21 = vector.extract_strided_slice %16 {offsets = [8, 0], sizes = [2, 8], strides = [1, 1]} : vector<16x8xf32> to vector<2x8xf32>
    %22 = vector.extract_strided_slice %16 {offsets = [10, 0], sizes = [2, 8], strides = [1, 1]} : vector<16x8xf32> to vector<2x8xf32>
    %23 = vector.extract_strided_slice %16 {offsets = [12, 0], sizes = [2, 8], strides = [1, 1]} : vector<16x8xf32> to vector<2x8xf32>
    %24 = vector.extract_strided_slice %16 {offsets = [14, 0], sizes = [2, 8], strides = [1, 1]} : vector<16x8xf32> to vector<2x8xf32>
    %25 = math.tanh %17 : vector<2x8xf32>
    %cst_10 = arith.constant dense<0.000000e+00> : vector<2x8xf32>
    %26 = tpu.matmul %25, %1, %cst_10 {dimension_numbers = #tpu.dot_dimension_numbers<[1], [0], [0], [1], [0, 0, 1, 1], [], []>} : vector<2x8xf32>, vector<8x8xf32>, vector<2x8xf32> -> vector<2x8xf32>
    %27 = arith.addf %18, %26 : vector<2x8xf32>
    %28 = math.tanh %27 : vector<2x8xf32>
    %cst_11 = arith.constant dense<0.000000e+00> : vector<2x8xf32>
    %29 = tpu.matmul %25, %2, %cst_11 {dimension_numbers = #tpu.dot_dimension_numbers<[1], [0], [0], [1], [0, 0, 1, 1], [], []>} : vector<2x8xf32>, vector<8x8xf32>, vector<2x8xf32> -> vector<2x8xf32>
    %30 = vector.broadcast %6 : vector<1x8xf32> to vector<2x8xf32>
    %31 = arith.addf %29, %30 : vector<2x8xf32>
    %32 = math.tanh %31 : vector<2x8xf32>
    %c0_12 = arith.constant 0 : index
    %c0_13 = arith.constant 0 : index
    %c0_14 = arith.constant 0 : index
    %33 = vector.load %arg3[%c0_12, %c0_13, %c0_14] : memref<2x8x8xf32, #tpu.memory_space<vmem>>, vector<2x1x8xf32>
    %34 = vector.shape_cast %33 : vector<2x1x8xf32> to vector<2x8xf32>
    %35 = vector.shape_cast %32 : vector<2x8xf32> to vector<2x1x8xf32>
    tpu.vector_store %arg3[%c0_12, %c0_13, %c0_14], %35 {strides = array<i32>} : memref<2x8x8xf32, #tpu.memory_space<vmem>>, vector<2x1x8xf32>,
    %cst_15 = arith.constant dense<0.000000e+00> : vector<2x8xf32>
    %36 = tpu.matmul %28, %1, %cst_15 {dimension_numbers = #tpu.dot_dimension_numbers<[1], [0], [0], [1], [0, 0, 1, 1], [], []>} : vector<2x8xf32>, vector<8x8xf32>, vector<2x8xf32> -> vector<2x8xf32>
    %37 = arith.addf %19, %36 : vector<2x8xf32>
    %38 = math.tanh %37 : vector<2x8xf32>
    %cst_16 = arith.constant dense<0.000000e+00> : vector<2x8xf32>
    %39 = tpu.matmul %28, %2, %cst_16 {dimension_numbers = #tpu.dot_dimension_numbers<[1], [0], [0], [1], [0, 0, 1, 1], [], []>} : vector<2x8xf32>, vector<8x8xf32>, vector<2x8xf32> -> vector<2x8xf32>
    %40 = vector.broadcast %6 : vector<1x8xf32> to vector<2x8xf32>
    %41 = arith.addf %39, %40 : vector<2x8xf32>
    %cst_17 = arith.constant dense<0.000000e+00> : vector<2x8xf32>
    %42 = tpu.matmul %32, %3, %cst_17 {dimension_numbers = #tpu.dot_dimension_numbers<[1], [0], [0], [1], [0, 0, 1, 1], [], []>} : vector<2x8xf32>, vector<8x8xf32>, vector<2x8xf32> -> vector<2x8xf32>
    %43 = arith.addf %41, %42 : vector<2x8xf32>
    %44 = math.tanh %43 : vector<2x8xf32>
    %c0_18 = arith.constant 0 : index
    %c1 = arith.constant 1 : index
    %c0_19 = arith.constant 0 : index
    %45 = vector.load %arg3[%c0_18, %c1, %c0_19] : memref<2x8x8xf32, #tpu.memory_space<vmem>>, vector<2x1x8xf32>
    %46 = vector.shape_cast %45 : vector<2x1x8xf32> to vector<2x8xf32>
    %47 = vector.shape_cast %44 : vector<2x8xf32> to vector<2x1x8xf32>
    tpu.vector_store %arg3[%c0_18, %c1, %c0_19], %47 {strides = array<i32>} : memref<2x8x8xf32, #tpu.memory_space<vmem>>, vector<2x1x8xf32>,
    %cst_20 = arith.constant dense<0.000000e+00> : vector<2x8xf32>
    %48 = tpu.matmul %38, %1, %cst_20 {dimension_numbers = #tpu.dot_dimension_numbers<[1], [0], [0], [1], [0, 0, 1, 1], [], []>} : vector<2x8xf32>, vector<8x8xf32>, vector<2x8xf32> -> vector<2x8xf32>
    %49 = arith.addf %20, %48 : vector<2x8xf32>
    %50 = math.tanh %49 : vector<2x8xf32>
    %cst_21 = arith.constant dense<0.000000e+00> : vector<2x8xf32>
    %51 = tpu.matmul %38, %2, %cst_21 {dimension_numbers = #tpu.dot_dimension_numbers<[1], [0], [0], [1], [0, 0, 1, 1], [], []>} : vector<2x8xf32>, vector<8x8xf32>, vector<2x8xf32> -> vector<2x8xf32>
    %52 = vector.broadcast %6 : vector<1x8xf32> to vector<2x8xf32>
    %53 = arith.addf %51, %52 : vector<2x8xf32>
    %cst_22 = arith.constant dense<0.000000e+00> : vector<2x8xf32>
    %54 = tpu.matmul %44, %3, %cst_22 {dimension_numbers = #tpu.dot_dimension_numbers<[1], [0], [0], [1], [0, 0, 1, 1], [], []>} : vector<2x8xf32>, vector<8x8xf32>, vector<2x8xf32> -> vector<2x8xf32>
    %55 = arith.addf %53, %54 : vector<2x8xf32>
    %56 = math.tanh %55 : vector<2x8xf32>
    %c0_23 = arith.constant 0 : index
    %c2 = arith.constant 2 : index
    %c0_24 = arith.constant 0 : index
    %57 = vector.load %arg3[%c0_23, %c2, %c0_24] : memref<2x8x8xf32, #tpu.memory_space<vmem>>, vector<2x1x8xf32>
    %58 = vector.shape_cast %57 : vector<2x1x8xf32> to vector<2x8xf32>
    %59 = vector.shape_cast %56 : vector<2x8xf32> to vector<2x1x8xf32>
    tpu.vector_store %arg3[%c0_23, %c2, %c0_24], %59 {strides = array<i32>} : memref<2x8x8xf32, #tpu.memory_space<vmem>>, vector<2x1x8xf32>,
    %cst_25 = arith.constant dense<0.000000e+00> : vector<2x8xf32>
    %60 = tpu.matmul %50, %1, %cst_25 {dimension_numbers = #tpu.dot_dimension_numbers<[1], [0], [0], [1], [0, 0, 1, 1], [], []>} : vector<2x8xf32>, vector<8x8xf32>, vector<2x8xf32> -> vector<2x8xf32>
    %61 = arith.addf %21, %60 : vector<2x8xf32>
    %62 = math.tanh %61 : vector<2x8xf32>
    %cst_26 = arith.constant dense<0.000000e+00> : vector<2x8xf32>
    %63 = tpu.matmul %50, %2, %cst_26 {dimension_numbers = #tpu.dot_dimension_numbers<[1], [0], [0], [1], [0, 0, 1, 1], [], []>} : vector<2x8xf32>, vector<8x8xf32>, vector<2x8xf32> -> vector<2x8xf32>
    %64 = vector.broadcast %6 : vector<1x8xf32> to vector<2x8xf32>
    %65 = arith.addf %63, %64 : vector<2x8xf32>
    %cst_27 = arith.constant dense<0.000000e+00> : vector<2x8xf32>
    %66 = tpu.matmul %56, %3, %cst_27 {dimension_numbers = #tpu.dot_dimension_numbers<[1], [0], [0], [1], [0, 0, 1, 1], [], []>} : vector<2x8xf32>, vector<8x8xf32>, vector<2x8xf32> -> vector<2x8xf32>
    %67 = arith.addf %65, %66 : vector<2x8xf32>
    %68 = math.tanh %67 : vector<2x8xf32>
    %c0_28 = arith.constant 0 : index
    %c3 = arith.constant 3 : index
    %c0_29 = arith.constant 0 : index
    %69 = vector.load %arg3[%c0_28, %c3, %c0_29] : memref<2x8x8xf32, #tpu.memory_space<vmem>>, vector<2x1x8xf32>
    %70 = vector.shape_cast %69 : vector<2x1x8xf32> to vector<2x8xf32>
    %71 = vector.shape_cast %68 : vector<2x8xf32> to vector<2x1x8xf32>
    tpu.vector_store %arg3[%c0_28, %c3, %c0_29], %71 {strides = array<i32>} : memref<2x8x8xf32, #tpu.memory_space<vmem>>, vector<2x1x8xf32>,
    %cst_30 = arith.constant dense<0.000000e+00> : vector<2x8xf32>
    %72 = tpu.matmul %62, %1, %cst_30 {dimension_numbers = #tpu.dot_dimension_numbers<[1], [0], [0], [1], [0, 0, 1, 1], [], []>} : vector<2x8xf32>, vector<8x8xf32>, vector<2x8xf32> -> vector<2x8xf32>
    %73 = arith.addf %22, %72 : vector<2x8xf32>
    %74 = math.tanh %73 : vector<2x8xf32>
    %cst_31 = arith.constant dense<0.000000e+00> : vector<2x8xf32>
    %75 = tpu.matmul %62, %2, %cst_31 {dimension_numbers = #tpu.dot_dimension_numbers<[1], [0], [0], [1], [0, 0, 1, 1], [], []>} : vector<2x8xf32>, vector<8x8xf32>, vector<2x8xf32> -> vector<2x8xf32>
    %76 = vector.broadcast %6 : vector<1x8xf32> to vector<2x8xf32>
    %77 = arith.addf %75, %76 : vector<2x8xf32>
    %cst_32 = arith.constant dense<0.000000e+00> : vector<2x8xf32>
    %78 = tpu.matmul %68, %3, %cst_32 {dimension_numbers = #tpu.dot_dimension_numbers<[1], [0], [0], [1], [0, 0, 1, 1], [], []>} : vector<2x8xf32>, vector<8x8xf32>, vector<2x8xf32> -> vector<2x8xf32>
    %79 = arith.addf %77, %78 : vector<2x8xf32>
    %80 = math.tanh %79 : vector<2x8xf32>
    %c0_33 = arith.constant 0 : index
    %c4 = arith.constant 4 : index
    %c0_34 = arith.constant 0 : index
    %81 = vector.load %arg3[%c0_33, %c4, %c0_34] : memref<2x8x8xf32, #tpu.memory_space<vmem>>, vector<2x1x8xf32>
    %82 = vector.shape_cast %81 : vector<2x1x8xf32> to vector<2x8xf32>
    %83 = vector.shape_cast %80 : vector<2x8xf32> to vector<2x1x8xf32>
    tpu.vector_store %arg3[%c0_33, %c4, %c0_34], %83 {strides = array<i32>} : memref<2x8x8xf32, #tpu.memory_space<vmem>>, vector<2x1x8xf32>,
    %cst_35 = arith.constant dense<0.000000e+00> : vector<2x8xf32>
    %84 = tpu.matmul %74, %1, %cst_35 {dimension_numbers = #tpu.dot_dimension_numbers<[1], [0], [0], [1], [0, 0, 1, 1], [], []>} : vector<2x8xf32>, vector<8x8xf32>, vector<2x8xf32> -> vector<2x8xf32>
    %85 = arith.addf %23, %84 : vector<2x8xf32>
    %86 = math.tanh %85 : vector<2x8xf32>
    %cst_36 = arith.constant dense<0.000000e+00> : vector<2x8xf32>
    %87 = tpu.matmul %74, %2, %cst_36 {dimension_numbers = #tpu.dot_dimension_numbers<[1], [0], [0], [1], [0, 0, 1, 1], [], []>} : vector<2x8xf32>, vector<8x8xf32>, vector<2x8xf32> -> vector<2x8xf32>
    %88 = vector.broadcast %6 : vector<1x8xf32> to vector<2x8xf32>
    %89 = arith.addf %87, %88 : vector<2x8xf32>
    %cst_37 = arith.constant dense<0.000000e+00> : vector<2x8xf32>
    %90 = tpu.matmul %80, %3, %cst_37 {dimension_numbers = #tpu.dot_dimension_numbers<[1], [0], [0], [1], [0, 0, 1, 1], [], []>} : vector<2x8xf32>, vector<8x8xf32>, vector<2x8xf32> -> vector<2x8xf32>
    %91 = arith.addf %89, %90 : vector<2x8xf32>
    %92 = math.tanh %91 : vector<2x8xf32>
    %c0_38 = arith.constant 0 : index
    %c5 = arith.constant 5 : index
    %c0_39 = arith.constant 0 : index
    %93 = vector.load %arg3[%c0_38, %c5, %c0_39] : memref<2x8x8xf32, #tpu.memory_space<vmem>>, vector<2x1x8xf32>
    %94 = vector.shape_cast %93 : vector<2x1x8xf32> to vector<2x8xf32>
    %95 = vector.shape_cast %92 : vector<2x8xf32> to vector<2x1x8xf32>
    tpu.vector_store %arg3[%c0_38, %c5, %c0_39], %95 {strides = array<i32>} : memref<2x8x8xf32, #tpu.memory_space<vmem>>, vector<2x1x8xf32>,
    %cst_40 = arith.constant dense<0.000000e+00> : vector<2x8xf32>
    %96 = tpu.matmul %86, %1, %cst_40 {dimension_numbers = #tpu.dot_dimension_numbers<[1], [0], [0], [1], [0, 0, 1, 1], [], []>} : vector<2x8xf32>, vector<8x8xf32>, vector<2x8xf32> -> vector<2x8xf32>
    %97 = arith.addf %24, %96 : vector<2x8xf32>
    %98 = math.tanh %97 : vector<2x8xf32>
    %cst_41 = arith.constant dense<0.000000e+00> : vector<2x8xf32>
    %99 = tpu.matmul %86, %2, %cst_41 {dimension_numbers = #tpu.dot_dimension_numbers<[1], [0], [0], [1], [0, 0, 1, 1], [], []>} : vector<2x8xf32>, vector<8x8xf32>, vector<2x8xf32> -> vector<2x8xf32>
    %100 = vector.broadcast %6 : vector<1x8xf32> to vector<2x8xf32>
    %101 = arith.addf %99, %100 : vector<2x8xf32>
    %cst_42 = arith.constant dense<0.000000e+00> : vector<2x8xf32>
    %102 = tpu.matmul %92, %3, %cst_42 {dimension_numbers = #tpu.dot_dimension_numbers<[1], [0], [0], [1], [0, 0, 1, 1], [], []>} : vector<2x8xf32>, vector<8x8xf32>, vector<2x8xf32> -> vector<2x8xf32>
    %103 = arith.addf %101, %102 : vector<2x8xf32>
    %104 = math.tanh %103 : vector<2x8xf32>
    %c0_43 = arith.constant 0 : index
    %c6 = arith.constant 6 : index
    %c0_44 = arith.constant 0 : index
    %105 = vector.load %arg3[%c0_43, %c6, %c0_44] : memref<2x8x8xf32, #tpu.memory_space<vmem>>, vector<2x1x8xf32>
    %106 = vector.shape_cast %105 : vector<2x1x8xf32> to vector<2x8xf32>
    %107 = vector.shape_cast %104 : vector<2x8xf32> to vector<2x1x8xf32>
    tpu.vector_store %arg3[%c0_43, %c6, %c0_44], %107 {strides = array<i32>} : memref<2x8x8xf32, #tpu.memory_space<vmem>>, vector<2x1x8xf32>,
    %cst_45 = arith.constant dense<0.000000e+00> : vector<2x8xf32>
    %108 = tpu.matmul %98, %2, %cst_45 {dimension_numbers = #tpu.dot_dimension_numbers<[1], [0], [0], [1], [0, 0, 1, 1], [], []>} : vector<2x8xf32>, vector<8x8xf32>, vector<2x8xf32> -> vector<2x8xf32>
    %109 = vector.broadcast %6 : vector<1x8xf32> to vector<2x8xf32>
    %110 = arith.addf %108, %109 : vector<2x8xf32>
    %cst_46 = arith.constant dense<0.000000e+00> : vector<2x8xf32>
    %111 = tpu.matmul %104, %3, %cst_46 {dimension_numbers = #tpu.dot_dimension_numbers<[1], [0], [0], [1], [0, 0, 1, 1], [], []>} : vector<2x8xf32>, vector<8x8xf32>, vector<2x8xf32> -> vector<2x8xf32>
    %112 = arith.addf %110, %111 : vector<2x8xf32>
    %113 = math.tanh %112 : vector<2x8xf32>
    %c0_47 = arith.constant 0 : index
    %c7 = arith.constant 7 : index
    %c0_48 = arith.constant 0 : index
    %114 = vector.load %arg3[%c0_47, %c7, %c0_48] : memref<2x8x8xf32, #tpu.memory_space<vmem>>, vector<2x1x8xf32>
    %115 = vector.shape_cast %114 : vector<2x1x8xf32> to vector<2x8xf32>
    %116 = vector.shape_cast %113 : vector<2x8xf32> to vector<2x1x8xf32>
    tpu.vector_store %arg3[%c0_47, %c7, %c0_48], %116 {strides = array<i32>} : memref<2x8x8xf32, #tpu.memory_space<vmem>>, vector<2x1x8xf32>,
    %c0_49 = arith.constant 0 : index
    %c0_50 = arith.constant 0 : index
    %c0_51 = arith.constant 0 : index
    %117 = vector.load %arg3[%c0_49, %c0_50, %c0_51] : memref<2x8x8xf32, #tpu.memory_space<vmem>>, vector<2x8x8xf32>
    %118 = vector.shape_cast %117 : vector<2x8x8xf32> to vector<16x8xf32>
    %cst_52 = arith.constant dense<0.000000e+00> : vector<16x8xf32>
    %119 = tpu.matmul %118, %4, %cst_52 {dimension_numbers = #tpu.dot_dimension_numbers<[1], [0], [0], [1], [0, 0, 1, 1], [], []>} : vector<16x8xf32>, vector<8x8xf32>, vector<16x8xf32> -> vector<16x8xf32>
    %120 = vector.broadcast %7 : vector<1x8xf32> to vector<16x8xf32>
    %121 = arith.addf %119, %120 : vector<16x8xf32>
    %122 = vector.extract_strided_slice %121 {offsets = [0, 0], sizes = [16, 4], strides = [1, 1]} : vector<16x8xf32> to vector<16x4xf32>
    %c0_53 = arith.constant 0 : index
    %c0_54 = arith.constant 0 : index
    %123 = vector.load %arg2[%c0_53, %c0_54] : memref<16x4xf32, #tpu.memory_space<vmem>>, vector<16x4xf32>
    tpu.vector_store %arg2[%c0_53, %c0_54], %122 {strides = array<i32>} : memref<16x4xf32, #tpu.memory_space<vmem>>, vector<16x4xf32>,
    return
  }
}

</mosaic_0001>

<llo_original>
// kernel: tpu_custom_call.1
$region0: #{tpu_custom_call.1}
  #allocation0 [shape = 'u32[]', space=smem, size = 0x4, offset = 0x4, fixed_abs, tag = 'smem constant byte address 0x4 - core index']
  #allocation1 [shape = 'u32[144,128]{1,0:T(1,128)}', space=vmem, size = 0x12000, scoped, tag = 'internal scratch']
  #allocation2 [shape = 'f32[2,8,8]{2,1,0:T(8,128)}', space=vmem, size = 0x2000, scoped, tag = 'scratch operand']
  %s0 = inlined_call_operand.vmem [shape: s32[16,1], index: 0, kind: input, shape index: {}]
  %s1 = inlined_call_operand.vmem [shape: f32[48,8], index: 1, kind: input, shape index: {}]
  %s2 = inlined_call_operand.vmem [shape: f32[16,4], index: 2, kind: output, shape index: {}]
  %s3 = sld [smem:[#allocation0]]
  $region18: #{tpu_custom_call.1} parent=0
    _
  %s5 = ssub.s32 1, %s3
  %s6 = scalar_select 0, %s5, %s3
  // Predicated region
  $region2: #{tpu_custom_call.1} parent=0 // pred_check
    _
  $region3: #{tpu_custom_call.1} parent=0 // pred_check_branch
    %8 = sbr.rel (0) target = $region5
  $region4: #{tpu_custom_call.1} parent=0 // pred_region
    _
  $region5: #{tpu_custom_call.1} parent=0 // pred_fallthru
    _
  // Predicated region
  $region6: #{tpu_custom_call.1} parent=0 // pred_check
    _
  $region7: #{tpu_custom_call.1} parent=0 // pred_check_branch
    %10 = sbr.rel (0) target = $region9
  $region8: #{tpu_custom_call.1} parent=0 // pred_region
    _
  $region9: #{tpu_custom_call.1} parent=0 // pred_fallthru
    _
  %v11 = vld [vmem:[%s1] sm:$0xf]
  %v12 = vld [vmem:[%s1 + $0x8] sm:$0xff]
  %v13 = vld [vmem:[%s1 + $0x10] sm:$0xff]
  %v14 = vld [vmem:[%s1 + $0x18] sm:$0xff]
  %v15 = vld [vmem:[%s1 + $0x20] sm:$0xff]
  %v16 = vld [vmem:[%s1 + $0x28] sm:$0x1]
  %v17 = vld [vmem:[%s1 + $0x29] sm:$0x1]
  %v18 = vld [vmem:[%s1 + $0x2a] sm:$0x1]
  %v19 = vld [vmem:[%s0] sm:$0xff]
  %v20 = vld [vmem:[%s0 + $0x8] sm:$0xff]
  %v21 = vlaneseq
  %v22 = vand.u32 %v21, 127
  %23 = vset.pattern.permute.xlu0 0
  %24 = vperm.xlu0 %23, %v19
  %v25 = vpop.permute.xlu0 %24
  %26 = vset.pattern.permute.xlu0 0
  %27 = vperm.xlu0 %26, %v20
  %v28 = vpop.permute.xlu0 %27
  %vm29 = vcmp.eq.s32.totalorder %v25, %v22
  %vm30 = vcmp.eq.s32.totalorder %v28, %v22
  %v31 = vsel %vm29, 1, 0
  %v32 = vsel %vm30, 1, 0
  %v33 = vcvt.s32.f32 %v31
  %v34 = vcvt.s32.f32 %v32
  %v35 = vlaneseq
  %v36 = vshrl.u32 %v35, 7
  %v37 = vsub.s32 0, %v36
  %v38 = vrot.slane %v16, %v37
  %vm39 = vcmask 31744
  %v41 = vsel %vm39, %v33, 0
  %v44 = vsel %vm39, %v34, 0
  %vm46 = vcmask 1043456
  %v48 = vsel %vm46, %v11, 0
  %50 = vmatprep.subr.mxu0 0.0
  %51 = vmatpush1.msra.mxu0 %v48
  %52 = vmatprep.subr.mxu0 0.0
  %53 = vmatpush1.msra.mxu0 0.0
  %54 = vmatprep.subr.mxu0 0.0
  %55 = vmatpush1.msra.mxu0 0.0
  %56 = vmatprep.subr.mxu0 0.0
  %57 = vmatpush1.msra.mxu0 0.0
  %58 = vmatprep.subr.mxu0 0.0
  %59 = vmatpush1.msra.mxu0 0.0
  %60 = vmatprep.subr.mxu0 0.0
  %61 = vmatpush1.msra.mxu0 0.0
  %62 = vmatprep.subr.mxu0 0.0
  %63 = vmatpush1.msra.mxu0 0.0
  %64 = vmatprep.subr.mxu0 0.0
  %65 = vmatpush1.msra.mxu0 0.0
  %66 = vmatprep.subr.mxu0 0.0
  %67 = vmatpush1.msra.mxu0 0.0
  %68 = vmatprep.subr.mxu0 0.0
  %69 = vmatpush1.msra.mxu0 0.0
  %70 = vmatprep.subr.mxu0 0.0
  %71 = vmatpush1.msra.mxu0 0.0
  %72 = vmatprep.subr.mxu0 0.0
  %73 = vmatpush1.msra.mxu0 0.0
  %74 = vmatprep.subr.mxu0 0.0
  %75 = vmatpush1.msra.mxu0 0.0
  %76 = vmatprep.subr.mxu0 0.0
  %77 = vmatpush1.msra.mxu0 0.0
  %78 = vmatprep.subr.mxu0 0.0
  %79 = vmatpush1.msra.mxu0 0.0
  %80 = vmatprep.subr.mxu0 0.0
  %81 = vmatpush1.msra.mxu0 0.0
  %82 = vmatprep.subr.mxu0 0.0
  %83 = vmatpush1.msra.mxu0 0.0
  %84 = vmatprep.subr.mxu0 0.0
  %85 = vmatpush1.msra.mxu0 0.0
  %86 = vmatprep.subr.mxu0 0.0
  %87 = vmatpush1.msra.mxu0 0.0
  %88 = vmatprep.subr.mxu0 0.0
  %89 = vmatpush1.msra.mxu0 0.0
  %90 = vmatprep.subr.mxu0 0.0
  %91 = vmatpush1.msra.mxu0 0.0
  %92 = vmatprep.subr.mxu0 0.0
  %93 = vmatpush1.msra.mxu0 0.0
  %94 = vmatprep.subr.mxu0 0.0
  %95 = vmatpush1.msra.mxu0 0.0
  %96 = vmatprep.subr.mxu0 0.0
  %97 = vmatpush1.msra.mxu0 0.0
  %98 = vmatprep.subr.mxu0 0.0
  %99 = vmatpush1.msra.mxu0 0.0
  %100 = vmatprep.subr.mxu0 0.0
  %101 = vmatpush1.msra.mxu0 0.0
  %102 = vmatprep.subr.mxu0 0.0
  %103 = vmatpush1.msra.mxu0 0.0
  %104 = vmatprep.subr.mxu0 0.0
  %105 = vmatpush1.msra.mxu0 0.0
  %106 = vmatprep.subr.mxu0 0.0
  %107 = vmatpush1.msra.mxu0 0.0
  %108 = vmatprep.subr.mxu0 0.0
  %109 = vmatpush1.msra.mxu0 0.0
  %110 = vmatprep.subr.mxu0 0.0
  %111 = vmatpush1.msra.mxu0 0.0
  %112 = vmatprep.subr.mxu0 0.0
  %113 = vmatpush1.msra.mxu0 0.0
  %114 = vmatprep.mubr.f32.mxu0 0.0
  %115 = vmatmul.mubr.f32.gmra.mrb[0].mxu0 %v41
  %v116 = vpop.f32.mrb[0].mxu0
  %v117 = vadd.f32 %v38, %v116
  %v118 = vpop.f32.mrb[0].mxu0
  %119 = vmatprep.mubr.f32.mxu0 0.0
  %120 = vmatmul.mubr.f32.gmra.mrb[0].mxu0 %v44
  %v121 = vpop.f32.mrb[0].mxu0
  %v122 = vadd.f32 %v38, %v121
  %v123 = vpop.f32.mrb[0].mxu0
  %124 = vdwg.mxu0
  %v125 = vtanh.pop %v117
  %vm126 = vcmask 64512
  %v128 = vsel %vm126, %v125, 0
  %130 = vmatprep.subr.mxu0 0.0
  %131 = vmatpush1.msra.mxu0 %v12
  %132 = vmatprep.subr.mxu0 0.0
  %133 = vmatpush1.msra.mxu0 0.0
  %134 = vmatprep.subr.mxu0 0.0
  %135 = vmatpush1.msra.mxu0 0.0
  %136 = vmatprep.subr.mxu0 0.0
  %137 = vmatpush1.msra.mxu0 0.0
  %138 = vmatprep.subr.mxu0 0.0
  %139 = vmatpush1.msra.mxu0 0.0
  %140 = vmatprep.subr.mxu0 0.0
  %141 = vmatpush1.msra.mxu0 0.0
  %142 = vmatprep.subr.mxu0 0.0
  %143 = vmatpush1.msra.mxu0 0.0
  %144 = vmatprep.subr.mxu0 0.0
  %145 = vmatpush1.msra.mxu0 0.0
  %146 = vmatprep.subr.mxu0 0.0
  %147 = vmatpush1.msra.mxu0 0.0
  %148 = vmatprep.subr.mxu0 0.0
  %149 = vmatpush1.msra.mxu0 0.0
  %150 = vmatprep.subr.mxu0 0.0
  %151 = vmatpush1.msra.mxu0 0.0
  %152 = vmatprep.subr.mxu0 0.0
  %153 = vmatpush1.msra.mxu0 0.0
  %154 = vmatprep.subr.mxu0 0.0
  %155 = vmatpush1.msra.mxu0 0.0
  %156 = vmatprep.subr.mxu0 0.0
  %157 = vmatpush1.msra.mxu0 0.0
  %158 = vmatprep.subr.mxu0 0.0
  %159 = vmatpush1.msra.mxu0 0.0
  %160 = vmatprep.subr.mxu0 0.0
  %161 = vmatpush1.msra.mxu0 0.0
  %162 = vmatprep.subr.mxu0 0.0
  %163 = vmatpush1.msra.mxu0 0.0
  %164 = vmatprep.subr.mxu0 0.0
  %165 = vmatpush1.msra.mxu0 0.0
  %166 = vmatprep.subr.mxu0 0.0
  %167 = vmatpush1.msra.mxu0 0.0
  %168 = vmatprep.subr.mxu0 0.0
  %169 = vmatpush1.msra.mxu0 0.0
  %170 = vmatprep.subr.mxu0 0.0
  %171 = vmatpush1.msra.mxu0 0.0
  %172 = vmatprep.subr.mxu0 0.0
  %173 = vmatpush1.msra.mxu0 0.0
  %174 = vmatprep.subr.mxu0 0.0
  %175 = vmatpush1.msra.mxu0 0.0
  %176 = vmatprep.subr.mxu0 0.0
  %177 = vmatpush1.msra.mxu0 0.0
  %178 = vmatprep.subr.mxu0 0.0
  %179 = vmatpush1.msra.mxu0 0.0
  %180 = vmatprep.subr.mxu0 0.0
  %181 = vmatpush1.msra.mxu0 0.0
  %182 = vmatprep.subr.mxu0 0.0
  %183 = vmatpush1.msra.mxu0 0.0
  %184 = vmatprep.subr.mxu0 0.0
  %185 = vmatpush1.msra.mxu0 0.0
  %186 = vmatprep.subr.mxu0 0.0
  %187 = vmatpush1.msra.mxu0 0.0
  %188 = vmatprep.subr.mxu0 0.0
  %189 = vmatpush1.msra.mxu0 0.0
  %190 = vmatprep.subr.mxu0 0.0
  %191 = vmatpush1.msra.mxu0 0.0
  %192 = vmatprep.subr.mxu0 0.0
  %193 = vmatpush1.msra.mxu0 0.0
  %194 = vmatprep.mubr.f32.mxu0 0.0
  %195 = vmatmul.mubr.f32.gmra.mrb[0].mxu0 %v128
  %v196 = vpop.f32.mrb[0].mxu0
  %v197 = vadd.f32 0.0, %v196
  %v198 = vpop.f32.mrb[0].mxu0
  %199 = vdwg.mxu0
  %v201 = vrot.slane %v197, 6
  %v203 = vadd.f32 %v117, %v201
  %v204 = vtanh.pop %v203
  %v205 = vlaneseq
  %v206 = vshrl.u32 %v205, 7
  %v207 = vsub.s32 0, %v206
  %v208 = vrot.slane %v17, %v207
  %209 = vmatprep.subr.mxu0 0.0
  %210 = vmatpush1.msra.mxu0 %v13
  %211 = vmatprep.subr.mxu0 0.0
  %212 = vmatpush1.msra.mxu0 0.0
  %213 = vmatprep.subr.mxu0 0.0
  %214 = vmatpush1.msra.mxu0 0.0
  %215 = vmatprep.subr.mxu0 0.0
  %216 = vmatpush1.msra.mxu0 0.0
  %217 = vmatprep.subr.mxu0 0.0
  %218 = vmatpush1.msra.mxu0 0.0
  %219 = vmatprep.subr.mxu0 0.0
  %220 = vmatpush1.msra.mxu0 0.0
  %221 = vmatprep.subr.mxu0 0.0
  %222 = vmatpush1.msra.mxu0 0.0
  %223 = vmatprep.subr.mxu0 0.0
  %224 = vmatpush1.msra.mxu0 0.0
  %225 = vmatprep.subr.mxu0 0.0
  %226 = vmatpush1.msra.mxu0 0.0
  %227 = vmatprep.subr.mxu0 0.0
  %228 = vmatpush1.msra.mxu0 0.0
  %229 = vmatprep.subr.mxu0 0.0
  %230 = vmatpush1.msra.mxu0 0.0
  %231 = vmatprep.subr.mxu0 0.0
  %232 = vmatpush1.msra.mxu0 0.0
  %233 = vmatprep.subr.mxu0 0.0
  %234 = vmatpush1.msra.mxu0 0.0
  %235 = vmatprep.subr.mxu0 0.0
  %236 = vmatpush1.msra.mxu0 0.0
  %237 = vmatprep.subr.mxu0 0.0
  %238 = vmatpush1.msra.mxu0 0.0
  %239 = vmatprep.subr.mxu0 0.0
  %240 = vmatpush1.msra.mxu0 0.0
  %241 = vmatprep.subr.mxu0 0.0
  %242 = vmatpush1.msra.mxu0 0.0
  %243 = vmatprep.subr.mxu0 0.0
  %244 = vmatpush1.msra.mxu0 0.0
  %245 = vmatprep.subr.mxu0 0.0
  %246 = vmatpush1.msra.mxu0 0.0
  %247 = vmatprep.subr.mxu0 0.0
  %248 = vmatpush1.msra.mxu0 0.0
  %249 = vmatprep.subr.mxu0 0.0
  %250 = vmatpush1.msra.mxu0 0.0
  %251 = vmatprep.subr.mxu0 0.0
  %252 = vmatpush1.msra.mxu0 0.0
  %253 = vmatprep.subr.mxu0 0.0
  %254 = vmatpush1.msra.mxu0 0.0
  %255 = vmatprep.subr.mxu0 0.0
  %256 = vmatpush1.msra.mxu0 0.0
  %257 = vmatprep.subr.mxu0 0.0
  %258 = vmatpush1.msra.mxu0 0.0
  %259 = vmatprep.subr.mxu0 0.0
  %260 = vmatpush1.msra.mxu0 0.0
  %261 = vmatprep.subr.mxu0 0.0
  %262 = vmatpush1.msra.mxu0 0.0
  %263 = vmatprep.subr.mxu0 0.0
  %264 = vmatpush1.msra.mxu0 0.0
  %265 = vmatprep.subr.mxu0 0.0
  %266 = vmatpush1.msra.mxu0 0.0
  %267 = vmatprep.subr.mxu0 0.0
  %268 = vmatpush1.msra.mxu0 0.0
  %269 = vmatprep.subr.mxu0 0.0
  %270 = vmatpush1.msra.mxu0 0.0
  %271 = vmatprep.subr.mxu0 0.0
  %272 = vmatpush1.msra.mxu0 0.0
  %273 = vmatprep.mubr.f32.mxu0 0.0
  %274 = vmatmul.mubr.f32.gmra.mrb[0].mxu0 %v128
  %v275 = vpop.f32.mrb[0].mxu0
  %v276 = vadd.f32 %v208, %v275
  %v277 = vpop.f32.mrb[0].mxu0
  %278 = vdwg.mxu0
  %v279 = vtanh.pop %v276
  %v282 = vunpack.c.l.s4 1966171168
  %v283 = vunpack.c.0.s8 %v282
  %v284 = vlaneseq
  %v285 = vshrl.u32 %v284, 7
  %v286 = vsub.s32 %v283, %v285
  %v287 = vrot.slane %v279, %v286
  %v288 = vcombine.high %v287, %v287
  %v290 = vunpack.c.l.s4 1966171168
  %v291 = vunpack.c.0.s8 %v290
  %v292 = vlaneseq
  %v293 = vshrl.u32 %v292, 7
  %v294 = vsub.s32 %v291, %v293
  %v295 = vrot.slane %v287, %v294
  %v297 = vunpack.c.l.s4 1966171168
  %v298 = vunpack.c.0.s8 %v297
  %v299 = vlaneseq
  %v300 = vshrl.u32 %v299, 7
  %v301 = vsub.s32 %v298, %v300
  %v302 = vrot.slane %v288, %v301
  %vm305 = vcmask 57344
  %306 = vst.msk [vmem:[#allocation2] sm:$0x1] %vm305, %v295
  %307 = vst.msk [vmem:[#allocation2 + $0x8] sm:$0x1] %vm305, %v302
  %v309 = vrot.slane %v204, 2
  %v310 = vsel %vm126, %v309, 0
  %312 = vmatprep.subr.mxu0 0.0
  %313 = vmatpush1.msra.mxu0 %v12
  %314 = vmatprep.subr.mxu0 0.0
  %315 = vmatpush1.msra.mxu0 0.0
  %316 = vmatprep.subr.mxu0 0.0
  %317 = vmatpush1.msra.mxu0 0.0
  %318 = vmatprep.subr.mxu0 0.0
  %319 = vmatpush1.msra.mxu0 0.0
  %320 = vmatprep.subr.mxu0 0.0
  %321 = vmatpush1.msra.mxu0 0.0
  %322 = vmatprep.subr.mxu0 0.0
  %323 = vmatpush1.msra.mxu0 0.0
  %324 = vmatprep.subr.mxu0 0.0
  %325 = vmatpush1.msra.mxu0 0.0
  %326 = vmatprep.subr.mxu0 0.0
  %327 = vmatpush1.msra.mxu0 0.0
  %328 = vmatprep.subr.mxu0 0.0
  %329 = vmatpush1.msra.mxu0 0.0
  %330 = vmatprep.subr.mxu0 0.0
  %331 = vmatpush1.msra.mxu0 0.0
  %332 = vmatprep.subr.mxu0 0.0
  %333 = vmatpush1.msra.mxu0 0.0
  %334 = vmatprep.subr.mxu0 0.0
  %335 = vmatpush1.msra.mxu0 0.0
  %336 = vmatprep.subr.mxu0 0.0
  %337 = vmatpush1.msra.mxu0 0.0
  %338 = vmatprep.subr.mxu0 0.0
  %339 = vmatpush1.msra.mxu0 0.0
  %340 = vmatprep.subr.mxu0 0.0
  %341 = vmatpush1.msra.mxu0 0.0
  %342 = vmatprep.subr.mxu0 0.0
  %343 = vmatpush1.msra.mxu0 0.0
  %344 = vmatprep.subr.mxu0 0.0
  %345 = vmatpush1.msra.mxu0 0.0
  %346 = vmatprep.subr.mxu0 0.0
  %347 = vmatpush1.msra.mxu0 0.0
  %348 = vmatprep.subr.mxu0 0.0
  %349 = vmatpush1.msra.mxu0 0.0
  %350 = vmatprep.subr.mxu0 0.0
  %351 = vmatpush1.msra.mxu0 0.0
  %352 = vmatprep.subr.mxu0 0.0
  %353 = vmatpush1.msra.mxu0 0.0
  %354 = vmatprep.subr.mxu0 0.0
  %355 = vmatpush1.msra.mxu0 0.0
  %356 = vmatprep.subr.mxu0 0.0
  %357 = vmatpush1.msra.mxu0 0.0
  %358 = vmatprep.subr.mxu0 0.0
  %359 = vmatpush1.msra.mxu0 0.0
  %360 = vmatprep.subr.mxu0 0.0
  %361 = vmatpush1.msra.mxu0 0.0
  %362 = vmatprep.subr.mxu0 0.0
  %363 = vmatpush1.msra.mxu0 0.0
  %364 = vmatprep.subr.mxu0 0.0
  %365 = vmatpush1.msra.mxu0 0.0
  %366 = vmatprep.subr.mxu0 0.0
  %367 = vmatpush1.msra.mxu0 0.0
  %368 = vmatprep.subr.mxu0 0.0
  %369 = vmatpush1.msra.mxu0 0.0
  %370 = vmatprep.subr.mxu0 0.0
  %371 = vmatpush1.msra.mxu0 0.0
  %372 = vmatprep.subr.mxu0 0.0
  %373 = vmatpush1.msra.mxu0 0.0
  %374 = vmatprep.subr.mxu0 0.0
  %375 = vmatpush1.msra.mxu0 0.0
  %376 = vmatprep.mubr.f32.mxu0 0.0
  %377 = vmatmul.mubr.f32.gmra.mrb[0].mxu0 %v310
  %v378 = vpop.f32.mrb[0].mxu0
  %v379 = vadd.f32 0.0, %v378
  %v380 = vpop.f32.mrb[0].mxu0
  %381 = vdwg.mxu0
  %v383 = vrot.slane %v379, 4
  %v385 = vadd.f32 %v117, %v383
  %v386 = vtanh.pop %v385
  %387 = vmatprep.subr.mxu0 0.0
  %388 = vmatpush1.msra.mxu0 %v13
  %389 = vmatprep.subr.mxu0 0.0
  %390 = vmatpush1.msra.mxu0 0.0
  %391 = vmatprep.subr.mxu0 0.0
  %392 = vmatpush1.msra.mxu0 0.0
  %393 = vmatprep.subr.mxu0 0.0
  %394 = vmatpush1.msra.mxu0 0.0
  %395 = vmatprep.subr.mxu0 0.0
  %396 = vmatpush1.msra.mxu0 0.0
  %397 = vmatprep.subr.mxu0 0.0
  %398 = vmatpush1.msra.mxu0 0.0
  %399 = vmatprep.subr.mxu0 0.0
  %400 = vmatpush1.msra.mxu0 0.0
  %401 = vmatprep.subr.mxu0 0.0
  %402 = vmatpush1.msra.mxu0 0.0
  %403 = vmatprep.subr.mxu0 0.0
  %404 = vmatpush1.msra.mxu0 0.0
  %405 = vmatprep.subr.mxu0 0.0
  %406 = vmatpush1.msra.mxu0 0.0
  %407 = vmatprep.subr.mxu0 0.0
  %408 = vmatpush1.msra.mxu0 0.0
  %409 = vmatprep.subr.mxu0 0.0
  %410 = vmatpush1.msra.mxu0 0.0
  %411 = vmatprep.subr.mxu0 0.0
  %412 = vmatpush1.msra.mxu0 0.0
  %413 = vmatprep.subr.mxu0 0.0
  %414 = vmatpush1.msra.mxu0 0.0
  %415 = vmatprep.subr.mxu0 0.0
  %416 = vmatpush1.msra.mxu0 0.0
  %417 = vmatprep.subr.mxu0 0.0
  %418 = vmatpush1.msra.mxu0 0.0
  %419 = vmatprep.subr.mxu0 0.0
  %420 = vmatpush1.msra.mxu0 0.0
  %421 = vmatprep.subr.mxu0 0.0
  %422 = vmatpush1.msra.mxu0 0.0
  %423 = vmatprep.subr.mxu0 0.0
  %424 = vmatpush1.msra.mxu0 0.0
  %425 = vmatprep.subr.mxu0 0.0
  %426 = vmatpush1.msra.mxu0 0.0
  %427 = vmatprep.subr.mxu0 0.0
  %428 = vmatpush1.msra.mxu0 0.0
  %429 = vmatprep.subr.mxu0 0.0
  %430 = vmatpush1.msra.mxu0 0.0
  %431 = vmatprep.subr.mxu0 0.0
  %432 = vmatpush1.msra.mxu0 0.0
  %433 = vmatprep.subr.mxu0 0.0
  %434 = vmatpush1.msra.mxu0 0.0
  %435 = vmatprep.subr.mxu0 0.0
  %436 = vmatpush1.msra.mxu0 0.0
  %437 = vmatprep.subr.mxu0 0.0
  %438 = vmatpush1.msra.mxu0 0.0
  %439 = vmatprep.subr.mxu0 0.0
  %440 = vmatpush1.msra.mxu0 0.0
  %441 = vmatprep.subr.mxu0 0.0
  %442 = vmatpush1.msra.mxu0 0.0
  %443 = vmatprep.subr.mxu0 0.0
  %444 = vmatpush1.msra.mxu0 0.0
  %445 = vmatprep.subr.mxu0 0.0
  %446 = vmatpush1.msra.mxu0 0.0
  %447 = vmatprep.subr.mxu0 0.0
  %448 = vmatpush1.msra.mxu0 0.0
  %449 = vmatprep.subr.mxu0 0.0
  %450 = vmatpush1.msra.mxu0 0.0
  %451 = vmatprep.mubr.f32.mxu0 0.0
  %452 = vmatmul.mubr.f32.gmra.mrb[0].mxu0 %v310
  %v453 = vpop.f32.mrb[0].mxu0
  %v454 = vadd.f32 %v208, %v453
  %v455 = vpop.f32.mrb[0].mxu0
  %456 = vdwg.mxu0
  %v457 = vsel %vm126, %v279, 0
  %459 = vmatprep.subr.mxu0 0.0
  %460 = vmatpush1.msra.mxu0 %v14
  %461 = vmatprep.subr.mxu0 0.0
  %462 = vmatpush1.msra.mxu0 0.0
  %463 = vmatprep.subr.mxu0 0.0
  %464 = vmatpush1.msra.mxu0 0.0
  %465 = vmatprep.subr.mxu0 0.0
  %466 = vmatpush1.msra.mxu0 0.0
  %467 = vmatprep.subr.mxu0 0.0
  %468 = vmatpush1.msra.mxu0 0.0
  %469 = vmatprep.subr.mxu0 0.0
  %470 = vmatpush1.msra.mxu0 0.0
  %471 = vmatprep.subr.mxu0 0.0
  %472 = vmatpush1.msra.mxu0 0.0
  %473 = vmatprep.subr.mxu0 0.0
  %474 = vmatpush1.msra.mxu0 0.0
  %475 = vmatprep.subr.mxu0 0.0
  %476 = vmatpush1.msra.mxu0 0.0
  %477 = vmatprep.subr.mxu0 0.0
  %478 = vmatpush1.msra.mxu0 0.0
  %479 = vmatprep.subr.mxu0 0.0
  %480 = vmatpush1.msra.mxu0 0.0
  %481 = vmatprep.subr.mxu0 0.0
  %482 = vmatpush1.msra.mxu0 0.0
  %483 = vmatprep.subr.mxu0 0.0
  %484 = vmatpush1.msra.mxu0 0.0
  %485 = vmatprep.subr.mxu0 0.0
  %486 = vmatpush1.msra.mxu0 0.0
  %487 = vmatprep.subr.mxu0 0.0
  %488 = vmatpush1.msra.mxu0 0.0
  %489 = vmatprep.subr.mxu0 0.0
  %490 = vmatpush1.msra.mxu0 0.0
  %491 = vmatprep.subr.mxu0 0.0
  %492 = vmatpush1.msra.mxu0 0.0
  %493 = vmatprep.subr.mxu0 0.0
  %494 = vmatpush1.msra.mxu0 0.0
  %495 = vmatprep.subr.mxu0 0.0
  %496 = vmatpush1.msra.mxu0 0.0
  %497 = vmatprep.subr.mxu0 0.0
  %498 = vmatpush1.msra.mxu0 0.0
  %499 = vmatprep.subr.mxu0 0.0
  %500 = vmatpush1.msra.mxu0 0.0
  %501 = vmatprep.subr.mxu0 0.0
  %502 = vmatpush1.msra.mxu0 0.0
  %503 = vmatprep.subr.mxu0 0.0
  %504 = vmatpush1.msra.mxu0 0.0
  %505 = vmatprep.subr.mxu0 0.0
  %506 = vmatpush1.msra.mxu0 0.0
  %507 = vmatprep.subr.mxu0 0.0
  %508 = vmatpush1.msra.mxu0 0.0
  %509 = vmatprep.subr.mxu0 0.0
  %510 = vmatpush1.msra.mxu0 0.0
  %511 = vmatprep.subr.mxu0 0.0
  %512 = vmatpush1.msra.mxu0 0.0
  %513 = vmatprep.subr.mxu0 0.0
  %514 = vmatpush1.msra.mxu0 0.0
  %515 = vmatprep.subr.mxu0 0.0
  %516 = vmatpush1.msra.mxu0 0.0
  %517 = vmatprep.subr.mxu0 0.0
  %518 = vmatpush1.msra.mxu0 0.0
  %519 = vmatprep.subr.mxu0 0.0
  %520 = vmatpush1.msra.mxu0 0.0
  %521 = vmatprep.subr.mxu0 0.0
  %522 = vmatpush1.msra.mxu0 0.0
  %523 = vmatprep.mubr.f32.mxu0 0.0
  %524 = vmatmul.mubr.f32.gmra.mrb[0].mxu0 %v457
  %v525 = vpop.f32.mrb[0].mxu0
  %v526 = vadd.f32 0.0, %v525
  %v527 = vpop.f32.mrb[0].mxu0
  %528 = vdwg.mxu0
  %v529 = vadd.f32 %v454, %v526
  %v530 = vtanh.pop %v529
  %v533 = vunpack.c.l.s4 1966171168
  %v534 = vunpack.c.0.s8 %v533
  %v535 = vlaneseq
  %v536 = vshrl.u32 %v535, 7
  %v537 = vsub.s32 %v534, %v536
  %v538 = vrot.slane %v530, %v537
  %v539 = vcombine.high %v538, %v538
  %v541 = vunpack.c.l.s4 1966171168
  %v542 = vunpack.c.0.s8 %v541
  %v543 = vlaneseq
  %v544 = vshrl.u32 %v543, 7
  %v545 = vsub.s32 %v542, %v544
  %v546 = vrot.slane %v538, %v545
  %v548 = vunpack.c.l.s4 1966171168
  %v549 = vunpack.c.0.s8 %v548
  %v550 = vlaneseq
  %v551 = vshrl.u32 %v550, 7
  %v552 = vsub.s32 %v549, %v551
  %v553 = vrot.slane %v539, %v552
  %556 = vst.msk [vmem:[#allocation2 + $0x1] sm:$0x1] %vm305, %v546
  %557 = vst.msk [vmem:[#allocation2 + $0x9] sm:$0x1] %vm305, %v553
  %v559 = vrot.slane %v386, 4
  %v560 = vsel %vm126, %v559, 0
  %562 = vmatprep.subr.mxu0 0.0
  %563 = vmatpush1.msra.mxu0 %v12
  %564 = vmatprep.subr.mxu0 0.0
  %565 = vmatpush1.msra.mxu0 0.0
  %566 = vmatprep.subr.mxu0 0.0
  %567 = vmatpush1.msra.mxu0 0.0
  %568 = vmatprep.subr.mxu0 0.0
  %569 = vmatpush1.msra.mxu0 0.0
  %570 = vmatprep.subr.mxu0 0.0
  %571 = vmatpush1.msra.mxu0 0.0
  %572 = vmatprep.subr.mxu0 0.0
  %573 = vmatpush1.msra.mxu0 0.0
  %574 = vmatprep.subr.mxu0 0.0
  %575 = vmatpush1.msra.mxu0 0.0
  %576 = vmatprep.subr.mxu0 0.0
  %577 = vmatpush1.msra.mxu0 0.0
  %578 = vmatprep.subr.mxu0 0.0
  %579 = vmatpush1.msra.mxu0 0.0
  %580 = vmatprep.subr.mxu0 0.0
  %581 = vmatpush1.msra.mxu0 0.0
  %582 = vmatprep.subr.mxu0 0.0
  %583 = vmatpush1.msra.mxu0 0.0
  %584 = vmatprep.subr.mxu0 0.0
  %585 = vmatpush1.msra.mxu0 0.0
  %586 = vmatprep.subr.mxu0 0.0
  %587 = vmatpush1.msra.mxu0 0.0
  %588 = vmatprep.subr.mxu0 0.0
  %589 = vmatpush1.msra.mxu0 0.0
  %590 = vmatprep.subr.mxu0 0.0
  %591 = vmatpush1.msra.mxu0 0.0
  %592 = vmatprep.subr.mxu0 0.0
  %593 = vmatpush1.msra.mxu0 0.0
  %594 = vmatprep.subr.mxu0 0.0
  %595 = vmatpush1.msra.mxu0 0.0
  %596 = vmatprep.subr.mxu0 0.0
  %597 = vmatpush1.msra.mxu0 0.0
  %598 = vmatprep.subr.mxu0 0.0
  %599 = vmatpush1.msra.mxu0 0.0
  %600 = vmatprep.subr.mxu0 0.0
  %601 = vmatpush1.msra.mxu0 0.0
  %602 = vmatprep.subr.mxu0 0.0
  %603 = vmatpush1.msra.mxu0 0.0
  %604 = vmatprep.subr.mxu0 0.0
  %605 = vmatpush1.msra.mxu0 0.0
  %606 = vmatprep.subr.mxu0 0.0
  %607 = vmatpush1.msra.mxu0 0.0
  %608 = vmatprep.subr.mxu0 0.0
  %609 = vmatpush1.msra.mxu0 0.0
  %610 = vmatprep.subr.mxu0 0.0
  %611 = vmatpush1.msra.mxu0 0.0
  %612 = vmatprep.subr.mxu0 0.0
  %613 = vmatpush1.msra.mxu0 0.0
  %614 = vmatprep.subr.mxu0 0.0
  %615 = vmatpush1.msra.mxu0 0.0
  %616 = vmatprep.subr.mxu0 0.0
  %617 = vmatpush1.msra.mxu0 0.0
  %618 = vmatprep.subr.mxu0 0.0
  %619 = vmatpush1.msra.mxu0 0.0
  %620 = vmatprep.subr.mxu0 0.0
  %621 = vmatpush1.msra.mxu0 0.0
  %622 = vmatprep.subr.mxu0 0.0
  %623 = vmatpush1.msra.mxu0 0.0
  %624 = vmatprep.subr.mxu0 0.0
  %625 = vmatpush1.msra.mxu0 0.0
  %626 = vmatprep.mubr.f32.mxu0 0.0
  %627 = vmatmul.mubr.f32.gmra.mrb[0].mxu0 %v560
  %v628 = vpop.f32.mrb[0].mxu0
  %v629 = vadd.f32 0.0, %v628
  %v630 = vpop.f32.mrb[0].mxu0
  %631 = vdwg.mxu0
  %v633 = vrot.slane %v629, 2
  %v635 = vadd.f32 %v117, %v633
  %v636 = vtanh.pop %v635
  %637 = vmatprep.subr.mxu0 0.0
  %638 = vmatpush1.msra.mxu0 %v13
  %639 = vmatprep.subr.mxu0 0.0
  %640 = vmatpush1.msra.mxu0 0.0
  %641 = vmatprep.subr.mxu0 0.0
  %642 = vmatpush1.msra.mxu0 0.0
  %643 = vmatprep.subr.mxu0 0.0
  %644 = vmatpush1.msra.mxu0 0.0
  %645 = vmatprep.subr.mxu0 0.0
  %646 = vmatpush1.msra.mxu0 0.0
  %647 = vmatprep.subr.mxu0 0.0
  %648 = vmatpush1.msra.mxu0 0.0
  %649 = vmatprep.subr.mxu0 0.0
  %650 = vmatpush1.msra.mxu0 0.0
  %651 = vmatprep.subr.mxu0 0.0
  %652 = vmatpush1.msra.mxu0 0.0
  %653 = vmatprep.subr.mxu0 0.0
  %654 = vmatpush1.msra.mxu0 0.0
  %655 = vmatprep.subr.mxu0 0.0
  %656 = vmatpush1.msra.mxu0 0.0
  %657 = vmatprep.subr.mxu0 0.0
  %658 = vmatpush1.msra.mxu0 0.0
  %659 = vmatprep.subr.mxu0 0.0
  %660 = vmatpush1.msra.mxu0 0.0
  %661 = vmatprep.subr.mxu0 0.0
  %662 = vmatpush1.msra.mxu0 0.0
  %663 = vmatprep.subr.mxu0 0.0
  %664 = vmatpush1.msra.mxu0 0.0
  %665 = vmatprep.subr.mxu0 0.0
  %666 = vmatpush1.msra.mxu0 0.0
  %667 = vmatprep.subr.mxu0 0.0
  %668 = vmatpush1.msra.mxu0 0.0
  %669 = vmatprep.subr.mxu0 0.0
  %670 = vmatpush1.msra.mxu0 0.0
  %671 = vmatprep.subr.mxu0 0.0
  %672 = vmatpush1.msra.mxu0 0.0
  %673 = vmatprep.subr.mxu0 0.0
  %674 = vmatpush1.msra.mxu0 0.0
  %675 = vmatprep.subr.mxu0 0.0
  %676 = vmatpush1.msra.mxu0 0.0
  %677 = vmatprep.subr.mxu0 0.0
  %678 = vmatpush1.msra.mxu0 0.0
  %679 = vmatprep.subr.mxu0 0.0
  %680 = vmatpush1.msra.mxu0 0.0
  %681 = vmatprep.subr.mxu0 0.0
  %682 = vmatpush1.msra.mxu0 0.0
  %683 = vmatprep.subr.mxu0 0.0
  %684 = vmatpush1.msra.mxu0 0.0
  %685 = vmatprep.subr.mxu0 0.0
  %686 = vmatpush1.msra.mxu0 0.0
  %687 = vmatprep.subr.mxu0 0.0
  %688 = vmatpush1.msra.mxu0 0.0
  %689 = vmatprep.subr.mxu0 0.0
  %690 = vmatpush1.msra.mxu0 0.0
  %691 = vmatprep.subr.mxu0 0.0
  %692 = vmatpush1.msra.mxu0 0.0
  %693 = vmatprep.subr.mxu0 0.0
  %694 = vmatpush1.msra.mxu0 0.0
  %695 = vmatprep.subr.mxu0 0.0
  %696 = vmatpush1.msra.mxu0 0.0
  %697 = vmatprep.subr.mxu0 0.0
  %698 = vmatpush1.msra.mxu0 0.0
  %699 = vmatprep.subr.mxu0 0.0
  %700 = vmatpush1.msra.mxu0 0.0
  %701 = vmatprep.mubr.f32.mxu0 0.0
  %702 = vmatmul.mubr.f32.gmra.mrb[0].mxu0 %v560
  %v703 = vpop.f32.mrb[0].mxu0
  %v704 = vadd.f32 %v208, %v703
  %v705 = vpop.f32.mrb[0].mxu0
  %706 = vdwg.mxu0
  %v707 = vsel %vm126, %v530, 0
  %709 = vmatprep.subr.mxu0 0.0
  %710 = vmatpush1.msra.mxu0 %v14
  %711 = vmatprep.subr.mxu0 0.0
  %712 = vmatpush1.msra.mxu0 0.0
  %713 = vmatprep.subr.mxu0 0.0
  %714 = vmatpush1.msra.mxu0 0.0
  %715 = vmatprep.subr.mxu0 0.0
  %716 = vmatpush1.msra.mxu0 0.0
  %717 = vmatprep.subr.mxu0 0.0
  %718 = vmatpush1.msra.mxu0 0.0
  %719 = vmatprep.subr.mxu0 0.0
  %720 = vmatpush1.msra.mxu0 0.0
  %721 = vmatprep.subr.mxu0 0.0
  %722 = vmatpush1.msra.mxu0 0.0
  %723 = vmatprep.subr.mxu0 0.0
  %724 = vmatpush1.msra.mxu0 0.0
  %725 = vmatprep.subr.mxu0 0.0
  %726 = vmatpush1.msra.mxu0 0.0
  %727 = vmatprep.subr.mxu0 0.0
  %728 = vmatpush1.msra.mxu0 0.0
  %729 = vmatprep.subr.mxu0 0.0
  %730 = vmatpush1.msra.mxu0 0.0
  %731 = vmatprep.subr.mxu0 0.0
  %732 = vmatpush1.msra.mxu0 0.0
  %733 = vmatprep.subr.mxu0 0.0
  %734 = vmatpush1.msra.mxu0 0.0
  %735 = vmatprep.subr.mxu0 0.0
  %736 = vmatpush1.msra.mxu0 0.0
  %737 = vmatprep.subr.mxu0 0.0
  %738 = vmatpush1.msra.mxu0 0.0
  %739 = vmatprep.subr.mxu0 0.0
  %740 = vmatpush1.msra.mxu0 0.0
  %741 = vmatprep.subr.mxu0 0.0
  %742 = vmatpush1.msra.mxu0 0.0
  %743 = vmatprep.subr.mxu0 0.0
  %744 = vmatpush1.msra.mxu0 0.0
  %745 = vmatprep.subr.mxu0 0.0
  %746 = vmatpush1.msra.mxu0 0.0
  %747 = vmatprep.subr.mxu0 0.0
  %748 = vmatpush1.msra.mxu0 0.0
  %749 = vmatprep.subr.mxu0 0.0
  %750 = vmatpush1.msra.mxu0 0.0
  %751 = vmatprep.subr.mxu0 0.0
  %752 = vmatpush1.msra.mxu0 0.0
  %753 = vmatprep.subr.mxu0 0.0
  %754 = vmatpush1.msra.mxu0 0.0
  %755 = vmatprep.subr.mxu0 0.0
  %756 = vmatpush1.msra.mxu0 0.0
  %757 = vmatprep.subr.mxu0 0.0
  %758 = vmatpush1.msra.mxu0 0.0
  %759 = vmatprep.subr.mxu0 0.0
  %760 = vmatpush1.msra.mxu0 0.0
  %761 = vmatprep.subr.mxu0 0.0
  %762 = vmatpush1.msra.mxu0 0.0
  %763 = vmatprep.subr.mxu0 0.0
  %764 = vmatpush1.msra.mxu0 0.0
  %765 = vmatprep.subr.mxu0 0.0
  %766 = vmatpush1.msra.mxu0 0.0
  %767 = vmatprep.subr.mxu0 0.0
  %768 = vmatpush1.msra.mxu0 0.0
  %769 = vmatprep.subr.mxu0 0.0
  %770 = vmatpush1.msra.mxu0 0.0
  %771 = vmatprep.subr.mxu0 0.0
  %772 = vmatpush1.msra.mxu0 0.0
  %773 = vmatprep.mubr.f32.mxu0 0.0
  %774 = vmatmul.mubr.f32.gmra.mrb[0].mxu0 %v707
  %v775 = vpop.f32.mrb[0].mxu0
  %v776 = vadd.f32 0.0, %v775
  %v777 = vpop.f32.mrb[0].mxu0
  %778 = vdwg.mxu0
  %v779 = vadd.f32 %v704, %v776
  %v780 = vtanh.pop %v779
  %v783 = vunpack.c.l.s4 1966171168
  %v784 = vunpack.c.0.s8 %v783
  %v785 = vlaneseq
  %v786 = vshrl.u32 %v785, 7
  %v787 = vsub.s32 %v784, %v786
  %v788 = vrot.slane %v780, %v787
  %v789 = vcombine.high %v788, %v788
  %v791 = vunpack.c.l.s4 1966171168
  %v792 = vunpack.c.0.s8 %v791
  %v793 = vlaneseq
  %v794 = vshrl.u32 %v793, 7
  %v795 = vsub.s32 %v792, %v794
  %v796 = vrot.slane %v788, %v795
  %v798 = vunpack.c.l.s4 1966171168
  %v799 = vunpack.c.0.s8 %v798
  %v800 = vlaneseq
  %v801 = vshrl.u32 %v800, 7
  %v802 = vsub.s32 %v799, %v801
  %v803 = vrot.slane %v789, %v802
  %806 = vst.msk [vmem:[#allocation2 + $0x2] sm:$0x1] %vm305, %v796
  %807 = vst.msk [vmem:[#allocation2 + $0xa] sm:$0x1] %vm305, %v803
  %v809 = vrot.slane %v636, 6
  %v810 = vsel %vm126, %v809, 0
  %812 = vmatprep.subr.mxu0 0.0
  %813 = vmatpush1.msra.mxu0 %v12
  %814 = vmatprep.subr.mxu0 0.0
  %815 = vmatpush1.msra.mxu0 0.0
  %816 = vmatprep.subr.mxu0 0.0
  %817 = vmatpush1.msra.mxu0 0.0
  %818 = vmatprep.subr.mxu0 0.0
  %819 = vmatpush1.msra.mxu0 0.0
  %820 = vmatprep.subr.mxu0 0.0
  %821 = vmatpush1.msra.mxu0 0.0
  %822 = vmatprep.subr.mxu0 0.0
  %823 = vmatpush1.msra.mxu0 0.0
  %824 = vmatprep.subr.mxu0 0.0
  %825 = vmatpush1.msra.mxu0 0.0
  %826 = vmatprep.subr.mxu0 0.0
  %827 = vmatpush1.msra.mxu0 0.0
  %828 = vmatprep.subr.mxu0 0.0
  %829 = vmatpush1.msra.mxu0 0.0
  %830 = vmatprep.subr.mxu0 0.0
  %831 = vmatpush1.msra.mxu0 0.0
  %832 = vmatprep.subr.mxu0 0.0
  %833 = vmatpush1.msra.mxu0 0.0
  %834 = vmatprep.subr.mxu0 0.0
  %835 = vmatpush1.msra.mxu0 0.0
  %836 = vmatprep.subr.mxu0 0.0
  %837 = vmatpush1.msra.mxu0 0.0
  %838 = vmatprep.subr.mxu0 0.0
  %839 = vmatpush1.msra.mxu0 0.0
  %840 = vmatprep.subr.mxu0 0.0
  %841 = vmatpush1.msra.mxu0 0.0
  %842 = vmatprep.subr.mxu0 0.0
  %843 = vmatpush1.msra.mxu0 0.0
  %844 = vmatprep.subr.mxu0 0.0
  %845 = vmatpush1.msra.mxu0 0.0
  %846 = vmatprep.subr.mxu0 0.0
  %847 = vmatpush1.msra.mxu0 0.0
  %848 = vmatprep.subr.mxu0 0.0
  %849 = vmatpush1.msra.mxu0 0.0
  %850 = vmatprep.subr.mxu0 0.0
  %851 = vmatpush1.msra.mxu0 0.0
  %852 = vmatprep.subr.mxu0 0.0
  %853 = vmatpush1.msra.mxu0 0.0
  %854 = vmatprep.subr.mxu0 0.0
  %855 = vmatpush1.msra.mxu0 0.0
  %856 = vmatprep.subr.mxu0 0.0
  %857 = vmatpush1.msra.mxu0 0.0
  %858 = vmatprep.subr.mxu0 0.0
  %859 = vmatpush1.msra.mxu0 0.0
  %860 = vmatprep.subr.mxu0 0.0
  %861 = vmatpush1.msra.mxu0 0.0
  %862 = vmatprep.subr.mxu0 0.0
  %863 = vmatpush1.msra.mxu0 0.0
  %864 = vmatprep.subr.mxu0 0.0
  %865 = vmatpush1.msra.mxu0 0.0
  %866 = vmatprep.subr.mxu0 0.0
  %867 = vmatpush1.msra.mxu0 0.0
  %868 = vmatprep.subr.mxu0 0.0
  %869 = vmatpush1.msra.mxu0 0.0
  %870 = vmatprep.subr.mxu0 0.0
  %871 = vmatpush1.msra.mxu0 0.0
  %872 = vmatprep.subr.mxu0 0.0
  %873 = vmatpush1.msra.mxu0 0.0
  %874 = vmatprep.subr.mxu0 0.0
  %875 = vmatpush1.msra.mxu0 0.0
  %876 = vmatprep.mubr.f32.mxu0 0.0
  %877 = vmatmul.mubr.f32.gmra.mrb[0].mxu0 %v810
  %v878 = vpop.f32.mrb[0].mxu0
  %v879 = vadd.f32 0.0, %v878
  %v880 = vpop.f32.mrb[0].mxu0
  %881 = vdwg.mxu0
  %v882 = vadd.f32 %v122, %v879
  %v883 = vtanh.pop %v882
  %884 = vmatprep.subr.mxu0 0.0
  %885 = vmatpush1.msra.mxu0 %v13
  %886 = vmatprep.subr.mxu0 0.0
  %887 = vmatpush1.msra.mxu0 0.0
  %888 = vmatprep.subr.mxu0 0.0
  %889 = vmatpush1.msra.mxu0 0.0
  %890 = vmatprep.subr.mxu0 0.0
  %891 = vmatpush1.msra.mxu0 0.0
  %892 = vmatprep.subr.mxu0 0.0
  %893 = vmatpush1.msra.mxu0 0.0
  %894 = vmatprep.subr.mxu0 0.0
  %895 = vmatpush1.msra.mxu0 0.0
  %896 = vmatprep.subr.mxu0 0.0
  %897 = vmatpush1.msra.mxu0 0.0
  %898 = vmatprep.subr.mxu0 0.0
  %899 = vmatpush1.msra.mxu0 0.0
  %900 = vmatprep.subr.mxu0 0.0
  %901 = vmatpush1.msra.mxu0 0.0
  %902 = vmatprep.subr.mxu0 0.0
  %903 = vmatpush1.msra.mxu0 0.0
  %904 = vmatprep.subr.mxu0 0.0
  %905 = vmatpush1.msra.mxu0 0.0
  %906 = vmatprep.subr.mxu0 0.0
  %907 = vmatpush1.msra.mxu0 0.0
  %908 = vmatprep.subr.mxu0 0.0
  %909 = vmatpush1.msra.mxu0 0.0
  %910 = vmatprep.subr.mxu0 0.0
  %911 = vmatpush1.msra.mxu0 0.0
  %912 = vmatprep.subr.mxu0 0.0
  %913 = vmatpush1.msra.mxu0 0.0
  %914 = vmatprep.subr.mxu0 0.0
  %915 = vmatpush1.msra.mxu0 0.0
  %916 = vmatprep.subr.mxu0 0.0
  %917 = vmatpush1.msra.mxu0 0.0
  %918 = vmatprep.subr.mxu0 0.0
  %919 = vmatpush1.msra.mxu0 0.0
  %920 = vmatprep.subr.mxu0 0.0
  %921 = vmatpush1.msra.mxu0 0.0
  %922 = vmatprep.subr.mxu0 0.0
  %923 = vmatpush1.msra.mxu0 0.0
  %924 = vmatprep.subr.mxu0 0.0
  %925 = vmatpush1.msra.mxu0 0.0
  %926 = vmatprep.subr.mxu0 0.0
  %927 = vmatpush1.msra.mxu0 0.0
  %928 = vmatprep.subr.mxu0 0.0
  %929 = vmatpush1.msra.mxu0 0.0
  %930 = vmatprep.subr.mxu0 0.0
  %931 = vmatpush1.msra.mxu0 0.0
  %932 = vmatprep.subr.mxu0 0.0
  %933 = vmatpush1.msra.mxu0 0.0
  %934 = vmatprep.subr.mxu0 0.0
  %935 = vmatpush1.msra.mxu0 0.0
  %936 = vmatprep.subr.mxu0 0.0
  %937 = vmatpush1.msra.mxu0 0.0
  %938 = vmatprep.subr.mxu0 0.0
  %939 = vmatpush1.msra.mxu0 0.0
  %940 = vmatprep.subr.mxu0 0.0
  %941 = vmatpush1.msra.mxu0 0.0
  %942 = vmatprep.subr.mxu0 0.0
  %943 = vmatpush1.msra.mxu0 0.0
  %944 = vmatprep.subr.mxu0 0.0
  %945 = vmatpush1.msra.mxu0 0.0
  %946 = vmatprep.subr.mxu0 0.0
  %947 = vmatpush1.msra.mxu0 0.0
  %948 = vmatprep.mubr.f32.mxu0 0.0
  %949 = vmatmul.mubr.f32.gmra.mrb[0].mxu0 %v810
  %v950 = vpop.f32.mrb[0].mxu0
  %v951 = vadd.f32 %v208, %v950
  %v952 = vpop.f32.mrb[0].mxu0
  %953 = vdwg.mxu0
  %v954 = vsel %vm126, %v780, 0
  %956 = vmatprep.subr.mxu0 0.0
  %957 = vmatpush1.msra.mxu0 %v14
  %958 = vmatprep.subr.mxu0 0.0
  %959 = vmatpush1.msra.mxu0 0.0
  %960 = vmatprep.subr.mxu0 0.0
  %961 = vmatpush1.msra.mxu0 0.0
  %962 = vmatprep.subr.mxu0 0.0
  %963 = vmatpush1.msra.mxu0 0.0
  %964 = vmatprep.subr.mxu0 0.0
  %965 = vmatpush1.msra.mxu0 0.0
  %966 = vmatprep.subr.mxu0 0.0
  %967 = vmatpush1.msra.mxu0 0.0
  %968 = vmatprep.subr.mxu0 0.0
  %969 = vmatpush1.msra.mxu0 0.0
  %970 = vmatprep.subr.mxu0 0.0
  %971 = vmatpush1.msra.mxu0 0.0
  %972 = vmatprep.subr.mxu0 0.0
  %973 = vmatpush1.msra.mxu0 0.0
  %974 = vmatprep.subr.mxu0 0.0
  %975 = vmatpush1.msra.mxu0 0.0
  %976 = vmatprep.subr.mxu0 0.0
  %977 = vmatpush1.msra.mxu0 0.0
  %978 = vmatprep.subr.mxu0 0.0
  %979 = vmatpush1.msra.mxu0 0.0
  %980 = vmatprep.subr.mxu0 0.0
  %981 = vmatpush1.msra.mxu0 0.0
  %982 = vmatprep.subr.mxu0 0.0
  %983 = vmatpush1.msra.mxu0 0.0
  %984 = vmatprep.subr.mxu0 0.0
  %985 = vmatpush1.msra.mxu0 0.0
  %986 = vmatprep.subr.mxu0 0.0
  %987 = vmatpush1.msra.mxu0 0.0
  %988 = vmatprep.subr.mxu0 0.0
  %989 = vmatpush1.msra.mxu0 0.0
  %990 = vmatprep.subr.mxu0 0.0
  %991 = vmatpush1.msra.mxu0 0.0
  %992 = vmatprep.subr.mxu0 0.0
  %993 = vmatpush1.msra.mxu0 0.0
  %994 = vmatprep.subr.mxu0 0.0
  %995 = vmatpush1.msra.mxu0 0.0
  %996 = vmatprep.subr.mxu0 0.0
  %997 = vmatpush1.msra.mxu0 0.0
  %998 = vmatprep.subr.mxu0 0.0
  %999 = vmatpush1.msra.mxu0 0.0
  %1000 = vmatprep.subr.mxu0 0.0
  %1001 = vmatpush1.msra.mxu0 0.0
  %1002 = vmatprep.subr.mxu0 0.0
  %1003 = vmatpush1.msra.mxu0 0.0
  %1004 = vmatprep.subr.mxu0 0.0
  %1005 = vmatpush1.msra.mxu0 0.0
  %1006 = vmatprep.subr.mxu0 0.0
  %1007 = vmatpush1.msra.mxu0 0.0
  %1008 = vmatprep.subr.mxu0 0.0
  %1009 = vmatpush1.msra.mxu0 0.0
  %1010 = vmatprep.subr.mxu0 0.0
  %1011 = vmatpush1.msra.mxu0 0.0
  %1012 = vmatprep.subr.mxu0 0.0
  %1013 = vmatpush1.msra.mxu0 0.0
  %1014 = vmatprep.subr.mxu0 0.0
  %1015 = vmatpush1.msra.mxu0 0.0
  %1016 = vmatprep.subr.mxu0 0.0
  %1017 = vmatpush1.msra.mxu0 0.0
  %1018 = vmatprep.subr.mxu0 0.0
  %1019 = vmatpush1.msra.mxu0 0.0
  %1020 = vmatprep.mubr.f32.mxu0 0.0
  %1021 = vmatmul.mubr.f32.gmra.mrb[0].mxu0 %v954
  %v1022 = vpop.f32.mrb[0].mxu0
  %v1023 = vadd.f32 0.0, %v1022
  %v1024 = vpop.f32.mrb[0].mxu0
  %1025 = vdwg.mxu0
  %v1026 = vadd.f32 %v951, %v1023
  %v1027 = vtanh.pop %v1026
  %v1030 = vunpack.c.l.s4 1966171168
  %v1031 = vunpack.c.0.s8 %v1030
  %v1032 = vlaneseq
  %v1033 = vshrl.u32 %v1032, 7
  %v1034 = vsub.s32 %v1031, %v1033
  %v1035 = vrot.slane %v1027, %v1034
  %v1036 = vcombine.high %v1035, %v1035
  %v1038 = vunpack.c.l.s4 1966171168
  %v1039 = vunpack.c.0.s8 %v1038
  %v1040 = vlaneseq
  %v1041 = vshrl.u32 %v1040, 7
  %v1042 = vsub.s32 %v1039, %v1041
  %v1043 = vrot.slane %v1035, %v1042
  %v1045 = vunpack.c.l.s4 1966171168
  %v1046 = vunpack.c.0.s8 %v1045
  %v1047 = vlaneseq
  %v1048 = vshrl.u32 %v1047, 7
  %v1049 = vsub.s32 %v1046, %v1048
  %v1050 = vrot.slane %v1036, %v1049
  %1053 = vst.msk [vmem:[#allocation2 + $0x3] sm:$0x1] %vm305, %v1043
  %1054 = vst.msk [vmem:[#allocation2 + $0xb] sm:$0x1] %vm305, %v1050
  %v1056 = vsel %vm126, %v883, 0
  %1058 = vmatprep.subr.mxu0 0.0
  %1059 = vmatpush1.msra.mxu0 %v12
  %1060 = vmatprep.subr.mxu0 0.0
  %1061 = vmatpush1.msra.mxu0 0.0
  %1062 = vmatprep.subr.mxu0 0.0
  %1063 = vmatpush1.msra.mxu0 0.0
  %1064 = vmatprep.subr.mxu0 0.0
  %1065 = vmatpush1.msra.mxu0 0.0
  %1066 = vmatprep.subr.mxu0 0.0
  %1067 = vmatpush1.msra.mxu0 0.0
  %1068 = vmatprep.subr.mxu0 0.0
  %1069 = vmatpush1.msra.mxu0 0.0
  %1070 = vmatprep.subr.mxu0 0.0
  %1071 = vmatpush1.msra.mxu0 0.0
  %1072 = vmatprep.subr.mxu0 0.0
  %1073 = vmatpush1.msra.mxu0 0.0
  %1074 = vmatprep.subr.mxu0 0.0
  %1075 = vmatpush1.msra.mxu0 0.0
  %1076 = vmatprep.subr.mxu0 0.0
  %1077 = vmatpush1.msra.mxu0 0.0
  %1078 = vmatprep.subr.mxu0 0.0
  %1079 = vmatpush1.msra.mxu0 0.0
  %1080 = vmatprep.subr.mxu0 0.0
  %1081 = vmatpush1.msra.mxu0 0.0
  %1082 = vmatprep.subr.mxu0 0.0
  %1083 = vmatpush1.msra.mxu0 0.0
  %1084 = vmatprep.subr.mxu0 0.0
  %1085 = vmatpush1.msra.mxu0 0.0
  %1086 = vmatprep.subr.mxu0 0.0
  %1087 = vmatpush1.msra.mxu0 0.0
  %1088 = vmatprep.subr.mxu0 0.0
  %1089 = vmatpush1.msra.mxu0 0.0
  %1090 = vmatprep.subr.mxu0 0.0
  %1091 = vmatpush1.msra.mxu0 0.0
  %1092 = vmatprep.subr.mxu0 0.0
  %1093 = vmatpush1.msra.mxu0 0.0
  %1094 = vmatprep.subr.mxu0 0.0
  %1095 = vmatpush1.msra.mxu0 0.0
  %1096 = vmatprep.subr.mxu0 0.0
  %1097 = vmatpush1.msra.mxu0 0.0
  %1098 = vmatprep.subr.mxu0 0.0
  %1099 = vmatpush1.msra.mxu0 0.0
  %1100 = vmatprep.subr.mxu0 0.0
  %1101 = vmatpush1.msra.mxu0 0.0
  %1102 = vmatprep.subr.mxu0 0.0
  %1103 = vmatpush1.msra.mxu0 0.0
  %1104 = vmatprep.subr.mxu0 0.0
  %1105 = vmatpush1.msra.mxu0 0.0
  %1106 = vmatprep.subr.mxu0 0.0
  %1107 = vmatpush1.msra.mxu0 0.0
  %1108 = vmatprep.subr.mxu0 0.0
  %1109 = vmatpush1.msra.mxu0 0.0
  %1110 = vmatprep.subr.mxu0 0.0
  %1111 = vmatpush1.msra.mxu0 0.0
  %1112 = vmatprep.subr.mxu0 0.0
  %1113 = vmatpush1.msra.mxu0 0.0
  %1114 = vmatprep.subr.mxu0 0.0
  %1115 = vmatpush1.msra.mxu0 0.0
  %1116 = vmatprep.subr.mxu0 0.0
  %1117 = vmatpush1.msra.mxu0 0.0
  %1118 = vmatprep.subr.mxu0 0.0
  %1119 = vmatpush1.msra.mxu0 0.0
  %1120 = vmatprep.subr.mxu0 0.0
  %1121 = vmatpush1.msra.mxu0 0.0
  %1122 = vmatprep.mubr.f32.mxu0 0.0
  %1123 = vmatmul.mubr.f32.gmra.mrb[0].mxu0 %v1056
  %v1124 = vpop.f32.mrb[0].mxu0
  %v1125 = vadd.f32 0.0, %v1124
  %v1126 = vpop.f32.mrb[0].mxu0
  %1127 = vdwg.mxu0
  %v1129 = vrot.slane %v1125, 6
  %v1131 = vadd.f32 %v122, %v1129
  %v1132 = vtanh.pop %v1131
  %1133 = vmatprep.subr.mxu0 0.0
  %1134 = vmatpush1.msra.mxu0 %v13
  %1135 = vmatprep.subr.mxu0 0.0
  %1136 = vmatpush1.msra.mxu0 0.0
  %1137 = vmatprep.subr.mxu0 0.0
  %1138 = vmatpush1.msra.mxu0 0.0
  %1139 = vmatprep.subr.mxu0 0.0
  %1140 = vmatpush1.msra.mxu0 0.0
  %1141 = vmatprep.subr.mxu0 0.0
  %1142 = vmatpush1.msra.mxu0 0.0
  %1143 = vmatprep.subr.mxu0 0.0
  %1144 = vmatpush1.msra.mxu0 0.0
  %1145 = vmatprep.subr.mxu0 0.0
  %1146 = vmatpush1.msra.mxu0 0.0
  %1147 = vmatprep.subr.mxu0 0.0
  %1148 = vmatpush1.msra.mxu0 0.0
  %1149 = vmatprep.subr.mxu0 0.0
  %1150 = vmatpush1.msra.mxu0 0.0
  %1151 = vmatprep.subr.mxu0 0.0
  %1152 = vmatpush1.msra.mxu0 0.0
  %1153 = vmatprep.subr.mxu0 0.0
  %1154 = vmatpush1.msra.mxu0 0.0
  %1155 = vmatprep.subr.mxu0 0.0
  %1156 = vmatpush1.msra.mxu0 0.0
  %1157 = vmatprep.subr.mxu0 0.0
  %1158 = vmatpush1.msra.mxu0 0.0
  %1159 = vmatprep.subr.mxu0 0.0
  %1160 = vmatpush1.msra.mxu0 0.0
  %1161 = vmatprep.subr.mxu0 0.0
  %1162 = vmatpush1.msra.mxu0 0.0
  %1163 = vmatprep.subr.mxu0 0.0
  %1164 = vmatpush1.msra.mxu0 0.0
  %1165 = vmatprep.subr.mxu0 0.0
  %1166 = vmatpush1.msra.mxu0 0.0
  %1167 = vmatprep.subr.mxu0 0.0
  %1168 = vmatpush1.msra.mxu0 0.0
  %1169 = vmatprep.subr.mxu0 0.0
  %1170 = vmatpush1.msra.mxu0 0.0
  %1171 = vmatprep.subr.mxu0 0.0
  %1172 = vmatpush1.msra.mxu0 0.0
  %1173 = vmatprep.subr.mxu0 0.0
  %1174 = vmatpush1.msra.mxu0 0.0
  %1175 = vmatprep.subr.mxu0 0.0
  %1176 = vmatpush1.msra.mxu0 0.0
  %1177 = vmatprep.subr.mxu0 0.0
  %1178 = vmatpush1.msra.mxu0 0.0
  %1179 = vmatprep.subr.mxu0 0.0
  %1180 = vmatpush1.msra.mxu0 0.0
  %1181 = vmatprep.subr.mxu0 0.0
  %1182 = vmatpush1.msra.mxu0 0.0
  %1183 = vmatprep.subr.mxu0 0.0
  %1184 = vmatpush1.msra.mxu0 0.0
  %1185 = vmatprep.subr.mxu0 0.0
  %1186 = vmatpush1.msra.mxu0 0.0
  %1187 = vmatprep.subr.mxu0 0.0
  %1188 = vmatpush1.msra.mxu0 0.0
  %1189 = vmatprep.subr.mxu0 0.0
  %1190 = vmatpush1.msra.mxu0 0.0
  %1191 = vmatprep.subr.mxu0 0.0
  %1192 = vmatpush1.msra.mxu0 0.0
  %1193 = vmatprep.subr.mxu0 0.0
  %1194 = vmatpush1.msra.mxu0 0.0
  %1195 = vmatprep.subr.mxu0 0.0
  %1196 = vmatpush1.msra.mxu0 0.0
  %1197 = vmatprep.mubr.f32.mxu0 0.0
  %1198 = vmatmul.mubr.f32.gmra.mrb[0].mxu0 %v1056
  %v1199 = vpop.f32.mrb[0].mxu0
  %v1200 = vadd.f32 %v208, %v1199
  %v1201 = vpop.f32.mrb[0].mxu0
  %1202 = vdwg.mxu0
  %v1203 = vsel %vm126, %v1027, 0
  %1205 = vmatprep.subr.mxu0 0.0
  %1206 = vmatpush1.msra.mxu0 %v14
  %1207 = vmatprep.subr.mxu0 0.0
  %1208 = vmatpush1.msra.mxu0 0.0
  %1209 = vmatprep.subr.mxu0 0.0
  %1210 = vmatpush1.msra.mxu0 0.0
  %1211 = vmatprep.subr.mxu0 0.0
  %1212 = vmatpush1.msra.mxu0 0.0
  %1213 = vmatprep.subr.mxu0 0.0
  %1214 = vmatpush1.msra.mxu0 0.0
  %1215 = vmatprep.subr.mxu0 0.0
  %1216 = vmatpush1.msra.mxu0 0.0
  %1217 = vmatprep.subr.mxu0 0.0
  %1218 = vmatpush1.msra.mxu0 0.0
  %1219 = vmatprep.subr.mxu0 0.0
  %1220 = vmatpush1.msra.mxu0 0.0
  %1221 = vmatprep.subr.mxu0 0.0
  %1222 = vmatpush1.msra.mxu0 0.0
  %1223 = vmatprep.subr.mxu0 0.0
  %1224 = vmatpush1.msra.mxu0 0.0
  %1225 = vmatprep.subr.mxu0 0.0
  %1226 = vmatpush1.msra.mxu0 0.0
  %1227 = vmatprep.subr.mxu0 0.0
  %1228 = vmatpush1.msra.mxu0 0.0
  %1229 = vmatprep.subr.mxu0 0.0
  %1230 = vmatpush1.msra.mxu0 0.0
  %1231 = vmatprep.subr.mxu0 0.0
  %1232 = vmatpush1.msra.mxu0 0.0
  %1233 = vmatprep.subr.mxu0 0.0
  %1234 = vmatpush1.msra.mxu0 0.0
  %1235 = vmatprep.subr.mxu0 0.0
  %1236 = vmatpush1.msra.mxu0 0.0
  %1237 = vmatprep.subr.mxu0 0.0
  %1238 = vmatpush1.msra.mxu0 0.0
  %1239 = vmatprep.subr.mxu0 0.0
  %1240 = vmatpush1.msra.mxu0 0.0
  %1241 = vmatprep.subr.mxu0 0.0
  %1242 = vmatpush1.msra.mxu0 0.0
  %1243 = vmatprep.subr.mxu0 0.0
  %1244 = vmatpush1.msra.mxu0 0.0
  %1245 = vmatprep.subr.mxu0 0.0
  %1246 = vmatpush1.msra.mxu0 0.0
  %1247 = vmatprep.subr.mxu0 0.0
  %1248 = vmatpush1.msra.mxu0 0.0
  %1249 = vmatprep.subr.mxu0 0.0
  %1250 = vmatpush1.msra.mxu0 0.0
  %1251 = vmatprep.subr.mxu0 0.0
  %1252 = vmatpush1.msra.mxu0 0.0
  %1253 = vmatprep.subr.mxu0 0.0
  %1254 = vmatpush1.msra.mxu0 0.0
  %1255 = vmatprep.subr.mxu0 0.0
  %1256 = vmatpush1.msra.mxu0 0.0
  %1257 = vmatprep.subr.mxu0 0.0
  %1258 = vmatpush1.msra.mxu0 0.0
  %1259 = vmatprep.subr.mxu0 0.0
  %1260 = vmatpush1.msra.mxu0 0.0
  %1261 = vmatprep.subr.mxu0 0.0
  %1262 = vmatpush1.msra.mxu0 0.0
  %1263 = vmatprep.subr.mxu0 0.0
  %1264 = vmatpush1.msra.mxu0 0.0
  %1265 = vmatprep.subr.mxu0 0.0
  %1266 = vmatpush1.msra.mxu0 0.0
  %1267 = vmatprep.subr.mxu0 0.0
  %1268 = vmatpush1.msra.mxu0 0.0
  %1269 = vmatprep.mubr.f32.mxu0 0.0
  %1270 = vmatmul.mubr.f32.gmra.mrb[0].mxu0 %v1203
  %v1271 = vpop.f32.mrb[0].mxu0
  %v1272 = vadd.f32 0.0, %v1271
  %v1273 = vpop.f32.mrb[0].mxu0
  %1274 = vdwg.mxu0
  %v1275 = vadd.f32 %v1200, %v1272
  %v1276 = vtanh.pop %v1275
  %v1279 = vunpack.c.l.s4 1966171168
  %v1280 = vunpack.c.0.s8 %v1279
  %v1281 = vlaneseq
  %v1282 = vshrl.u32 %v1281, 7
  %v1283 = vsub.s32 %v1280, %v1282
  %v1284 = vrot.slane %v1276, %v1283
  %v1285 = vcombine.high %v1284, %v1284
  %v1287 = vunpack.c.l.s4 1966171168
  %v1288 = vunpack.c.0.s8 %v1287
  %v1289 = vlaneseq
  %v1290 = vshrl.u32 %v1289, 7
  %v1291 = vsub.s32 %v1288, %v1290
  %v1292 = vrot.slane %v1284, %v1291
  %v1294 = vunpack.c.l.s4 1966171168
  %v1295 = vunpack.c.0.s8 %v1294
  %v1296 = vlaneseq
  %v1297 = vshrl.u32 %v1296, 7
  %v1298 = vsub.s32 %v1295, %v1297
  %v1299 = vrot.slane %v1285, %v1298
  %1302 = vst.msk [vmem:[#allocation2 + $0x4] sm:$0x1] %vm305, %v1292
  %1303 = vst.msk [vmem:[#allocation2 + $0xc] sm:$0x1] %vm305, %v1299
  %v1305 = vrot.slane %v1132, 2
  %v1306 = vsel %vm126, %v1305, 0
  %1308 = vmatprep.subr.mxu0 0.0
  %1309 = vmatpush1.msra.mxu0 %v12
  %1310 = vmatprep.subr.mxu0 0.0
  %1311 = vmatpush1.msra.mxu0 0.0
  %1312 = vmatprep.subr.mxu0 0.0
  %1313 = vmatpush1.msra.mxu0 0.0
  %1314 = vmatprep.subr.mxu0 0.0
  %1315 = vmatpush1.msra.mxu0 0.0
  %1316 = vmatprep.subr.mxu0 0.0
  %1317 = vmatpush1.msra.mxu0 0.0
  %1318 = vmatprep.subr.mxu0 0.0
  %1319 = vmatpush1.msra.mxu0 0.0
  %1320 = vmatprep.subr.mxu0 0.0
  %1321 = vmatpush1.msra.mxu0 0.0
  %1322 = vmatprep.subr.mxu0 0.0
  %1323 = vmatpush1.msra.mxu0 0.0
  %1324 = vmatprep.subr.mxu0 0.0
  %1325 = vmatpush1.msra.mxu0 0.0
  %1326 = vmatprep.subr.mxu0 0.0
  %1327 = vmatpush1.msra.mxu0 0.0
  %1328 = vmatprep.subr.mxu0 0.0
  %1329 = vmatpush1.msra.mxu0 0.0
  %1330 = vmatprep.subr.mxu0 0.0
  %1331 = vmatpush1.msra.mxu0 0.0
  %1332 = vmatprep.subr.mxu0 0.0
  %1333 = vmatpush1.msra.mxu0 0.0
  %1334 = vmatprep.subr.mxu0 0.0
  %1335 = vmatpush1.msra.mxu0 0.0
  %1336 = vmatprep.subr.mxu0 0.0
  %1337 = vmatpush1.msra.mxu0 0.0
  %1338 = vmatprep.subr.mxu0 0.0
  %1339 = vmatpush1.msra.mxu0 0.0
  %1340 = vmatprep.subr.mxu0 0.0
  %1341 = vmatpush1.msra.mxu0 0.0
  %1342 = vmatprep.subr.mxu0 0.0
  %1343 = vmatpush1.msra.mxu0 0.0
  %1344 = vmatprep.subr.mxu0 0.0
  %1345 = vmatpush1.msra.mxu0 0.0
  %1346 = vmatprep.subr.mxu0 0.0
  %1347 = vmatpush1.msra.mxu0 0.0
  %1348 = vmatprep.subr.mxu0 0.0
  %1349 = vmatpush1.msra.mxu0 0.0
  %1350 = vmatprep.subr.mxu0 0.0
  %1351 = vmatpush1.msra.mxu0 0.0
  %1352 = vmatprep.subr.mxu0 0.0
  %1353 = vmatpush1.msra.mxu0 0.0
  %1354 = vmatprep.subr.mxu0 0.0
  %1355 = vmatpush1.msra.mxu0 0.0
  %1356 = vmatprep.subr.mxu0 0.0
  %1357 = vmatpush1.msra.mxu0 0.0
  %1358 = vmatprep.subr.mxu0 0.0
  %1359 = vmatpush1.msra.mxu0 0.0
  %1360 = vmatprep.subr.mxu0 0.0
  %1361 = vmatpush1.msra.mxu0 0.0
  %1362 = vmatprep.subr.mxu0 0.0
  %1363 = vmatpush1.msra.mxu0 0.0
  %1364 = vmatprep.subr.mxu0 0.0
  %1365 = vmatpush1.msra.mxu0 0.0
  %1366 = vmatprep.subr.mxu0 0.0
  %1367 = vmatpush1.msra.mxu0 0.0
  %1368 = vmatprep.subr.mxu0 0.0
  %1369 = vmatpush1.msra.mxu0 0.0
  %1370 = vmatprep.subr.mxu0 0.0
  %1371 = vmatpush1.msra.mxu0 0.0
  %1372 = vmatprep.mubr.f32.mxu0 0.0
  %1373 = vmatmul.mubr.f32.gmra.mrb[0].mxu0 %v1306
  %v1374 = vpop.f32.mrb[0].mxu0
  %v1375 = vadd.f32 0.0, %v1374
  %v1376 = vpop.f32.mrb[0].mxu0
  %1377 = vdwg.mxu0
  %v1379 = vrot.slane %v1375, 4
  %v1381 = vadd.f32 %v122, %v1379
  %v1382 = vtanh.pop %v1381
  %1383 = vmatprep.subr.mxu0 0.0
  %1384 = vmatpush1.msra.mxu0 %v13
  %1385 = vmatprep.subr.mxu0 0.0
  %1386 = vmatpush1.msra.mxu0 0.0
  %1387 = vmatprep.subr.mxu0 0.0
  %1388 = vmatpush1.msra.mxu0 0.0
  %1389 = vmatprep.subr.mxu0 0.0
  %1390 = vmatpush1.msra.mxu0 0.0
  %1391 = vmatprep.subr.mxu0 0.0
  %1392 = vmatpush1.msra.mxu0 0.0
  %1393 = vmatprep.subr.mxu0 0.0
  %1394 = vmatpush1.msra.mxu0 0.0
  %1395 = vmatprep.subr.mxu0 0.0
  %1396 = vmatpush1.msra.mxu0 0.0
  %1397 = vmatprep.subr.mxu0 0.0
  %1398 = vmatpush1.msra.mxu0 0.0
  %1399 = vmatprep.subr.mxu0 0.0
  %1400 = vmatpush1.msra.mxu0 0.0
  %1401 = vmatprep.subr.mxu0 0.0
  %1402 = vmatpush1.msra.mxu0 0.0
  %1403 = vmatprep.subr.mxu0 0.0
  %1404 = vmatpush1.msra.mxu0 0.0
  %1405 = vmatprep.subr.mxu0 0.0
  %1406 = vmatpush1.msra.mxu0 0.0
  %1407 = vmatprep.subr.mxu0 0.0
  %1408 = vmatpush1.msra.mxu0 0.0
  %1409 = vmatprep.subr.mxu0 0.0
  %1410 = vmatpush1.msra.mxu0 0.0
  %1411 = vmatprep.subr.mxu0 0.0
  %1412 = vmatpush1.msra.mxu0 0.0
  %1413 = vmatprep.subr.mxu0 0.0
  %1414 = vmatpush1.msra.mxu0 0.0
  %1415 = vmatprep.subr.mxu0 0.0
  %1416 = vmatpush1.msra.mxu0 0.0
  %1417 = vmatprep.subr.mxu0 0.0
  %1418 = vmatpush1.msra.mxu0 0.0
  %1419 = vmatprep.subr.mxu0 0.0
  %1420 = vmatpush1.msra.mxu0 0.0
  %1421 = vmatprep.subr.mxu0 0.0
  %1422 = vmatpush1.msra.mxu0 0.0
  %1423 = vmatprep.subr.mxu0 0.0
  %1424 = vmatpush1.msra.mxu0 0.0
  %1425 = vmatprep.subr.mxu0 0.0
  %1426 = vmatpush1.msra.mxu0 0.0
  %1427 = vmatprep.subr.mxu0 0.0
  %1428 = vmatpush1.msra.mxu0 0.0
  %1429 = vmatprep.subr.mxu0 0.0
  %1430 = vmatpush1.msra.mxu0 0.0
  %1431 = vmatprep.subr.mxu0 0.0
  %1432 = vmatpush1.msra.mxu0 0.0
  %1433 = vmatprep.subr.mxu0 0.0
  %1434 = vmatpush1.msra.mxu0 0.0
  %1435 = vmatprep.subr.mxu0 0.0
  %1436 = vmatpush1.msra.mxu0 0.0
  %1437 = vmatprep.subr.mxu0 0.0
  %1438 = vmatpush1.msra.mxu0 0.0
  %1439 = vmatprep.subr.mxu0 0.0
  %1440 = vmatpush1.msra.mxu0 0.0
  %1441 = vmatprep.subr.mxu0 0.0
  %1442 = vmatpush1.msra.mxu0 0.0
  %1443 = vmatprep.subr.mxu0 0.0
  %1444 = vmatpush1.msra.mxu0 0.0
  %1445 = vmatprep.subr.mxu0 0.0
  %1446 = vmatpush1.msra.mxu0 0.0
  %1447 = vmatprep.mubr.f32.mxu0 0.0
  %1448 = vmatmul.mubr.f32.gmra.mrb[0].mxu0 %v1306
  %v1449 = vpop.f32.mrb[0].mxu0
  %v1450 = vadd.f32 %v208, %v1449
  %v1451 = vpop.f32.mrb[0].mxu0
  %1452 = vdwg.mxu0
  %v1453 = vsel %vm126, %v1276, 0
  %1455 = vmatprep.subr.mxu0 0.0
  %1456 = vmatpush1.msra.mxu0 %v14
  %1457 = vmatprep.subr.mxu0 0.0
  %1458 = vmatpush1.msra.mxu0 0.0
  %1459 = vmatprep.subr.mxu0 0.0
  %1460 = vmatpush1.msra.mxu0 0.0
  %1461 = vmatprep.subr.mxu0 0.0
  %1462 = vmatpush1.msra.mxu0 0.0
  %1463 = vmatprep.subr.mxu0 0.0
  %1464 = vmatpush1.msra.mxu0 0.0
  %1465 = vmatprep.subr.mxu0 0.0
  %1466 = vmatpush1.msra.mxu0 0.0
  %1467 = vmatprep.subr.mxu0 0.0
  %1468 = vmatpush1.msra.mxu0 0.0
  %1469 = vmatprep.subr.mxu0 0.0
  %1470 = vmatpush1.msra.mxu0 0.0
  %1471 = vmatprep.subr.mxu0 0.0
  %1472 = vmatpush1.msra.mxu0 0.0
  %1473 = vmatprep.subr.mxu0 0.0
  %1474 = vmatpush1.msra.mxu0 0.0
  %1475 = vmatprep.subr.mxu0 0.0
  %1476 = vmatpush1.msra.mxu0 0.0
  %1477 = vmatprep.subr.mxu0 0.0
  %1478 = vmatpush1.msra.mxu0 0.0
  %1479 = vmatprep.subr.mxu0 0.0
  %1480 = vmatpush1.msra.mxu0 0.0
  %1481 = vmatprep.subr.mxu0 0.0
  %1482 = vmatpush1.msra.mxu0 0.0
  %1483 = vmatprep.subr.mxu0 0.0
  %1484 = vmatpush1.msra.mxu0 0.0
  %1485 = vmatprep.subr.mxu0 0.0
  %1486 = vmatpush1.msra.mxu0 0.0
  %1487 = vmatprep.subr.mxu0 0.0
  %1488 = vmatpush1.msra.mxu0 0.0
  %1489 = vmatprep.subr.mxu0 0.0
  %1490 = vmatpush1.msra.mxu0 0.0
  %1491 = vmatprep.subr.mxu0 0.0
  %1492 = vmatpush1.msra.mxu0 0.0
  %1493 = vmatprep.subr.mxu0 0.0
  %1494 = vmatpush1.msra.mxu0 0.0
  %1495 = vmatprep.subr.mxu0 0.0
  %1496 = vmatpush1.msra.mxu0 0.0
  %1497 = vmatprep.subr.mxu0 0.0
  %1498 = vmatpush1.msra.mxu0 0.0
  %1499 = vmatprep.subr.mxu0 0.0
  %1500 = vmatpush1.msra.mxu0 0.0
  %1501 = vmatprep.subr.mxu0 0.0
  %1502 = vmatpush1.msra.mxu0 0.0
  %1503 = vmatprep.subr.mxu0 0.0
  %1504 = vmatpush1.msra.mxu0 0.0
  %1505 = vmatprep.subr.mxu0 0.0
  %1506 = vmatpush1.msra.mxu0 0.0
  %1507 = vmatprep.subr.mxu0 0.0
  %1508 = vmatpush1.msra.mxu0 0.0
  %1509 = vmatprep.subr.mxu0 0.0
  %1510 = vmatpush1.msra.mxu0 0.0
  %1511 = vmatprep.subr.mxu0 0.0
  %1512 = vmatpush1.msra.mxu0 0.0
  %1513 = vmatprep.subr.mxu0 0.0
  %1514 = vmatpush1.msra.mxu0 0.0
  %1515 = vmatprep.subr.mxu0 0.0
  %1516 = vmatpush1.msra.mxu0 0.0
  %1517 = vmatprep.subr.mxu0 0.0
  %1518 = vmatpush1.msra.mxu0 0.0
  %1519 = vmatprep.mubr.f32.mxu0 0.0
  %1520 = vmatmul.mubr.f32.gmra.mrb[0].mxu0 %v1453
  %v1521 = vpop.f32.mrb[0].mxu0
  %v1522 = vadd.f32 0.0, %v1521
  %v1523 = vpop.f32.mrb[0].mxu0
  %1524 = vdwg.mxu0
  %v1525 = vadd.f32 %v1450, %v1522
  %v1526 = vtanh.pop %v1525
  %v1529 = vunpack.c.l.s4 1966171168
  %v1530 = vunpack.c.0.s8 %v1529
  %v1531 = vlaneseq
  %v1532 = vshrl.u32 %v1531, 7
  %v1533 = vsub.s32 %v1530, %v1532
  %v1534 = vrot.slane %v1526, %v1533
  %v1535 = vcombine.high %v1534, %v1534
  %v1537 = vunpack.c.l.s4 1966171168
  %v1538 = vunpack.c.0.s8 %v1537
  %v1539 = vlaneseq
  %v1540 = vshrl.u32 %v1539, 7
  %v1541 = vsub.s32 %v1538, %v1540
  %v1542 = vrot.slane %v1534, %v1541
  %v1544 = vunpack.c.l.s4 1966171168
  %v1545 = vunpack.c.0.s8 %v1544
  %v1546 = vlaneseq
  %v1547 = vshrl.u32 %v1546, 7
  %v1548 = vsub.s32 %v1545, %v1547
  %v1549 = vrot.slane %v1535, %v1548
  %1552 = vst.msk [vmem:[#allocation2 + $0x5] sm:$0x1] %vm305, %v1542
  %1553 = vst.msk [vmem:[#allocation2 + $0xd] sm:$0x1] %vm305, %v1549
  %v1555 = vrot.slane %v1382, 4
  %v1556 = vsel %vm126, %v1555, 0
  %1558 = vmatprep.subr.mxu0 0.0
  %1559 = vmatpush1.msra.mxu0 %v12
  %1560 = vmatprep.subr.mxu0 0.0
  %1561 = vmatpush1.msra.mxu0 0.0
  %1562 = vmatprep.subr.mxu0 0.0
  %1563 = vmatpush1.msra.mxu0 0.0
  %1564 = vmatprep.subr.mxu0 0.0
  %1565 = vmatpush1.msra.mxu0 0.0
  %1566 = vmatprep.subr.mxu0 0.0
  %1567 = vmatpush1.msra.mxu0 0.0
  %1568 = vmatprep.subr.mxu0 0.0
  %1569 = vmatpush1.msra.mxu0 0.0
  %1570 = vmatprep.subr.mxu0 0.0
  %1571 = vmatpush1.msra.mxu0 0.0
  %1572 = vmatprep.subr.mxu0 0.0
  %1573 = vmatpush1.msra.mxu0 0.0
  %1574 = vmatprep.subr.mxu0 0.0
  %1575 = vmatpush1.msra.mxu0 0.0
  %1576 = vmatprep.subr.mxu0 0.0
  %1577 = vmatpush1.msra.mxu0 0.0
  %1578 = vmatprep.subr.mxu0 0.0
  %1579 = vmatpush1.msra.mxu0 0.0
  %1580 = vmatprep.subr.mxu0 0.0
  %1581 = vmatpush1.msra.mxu0 0.0
  %1582 = vmatprep.subr.mxu0 0.0
  %1583 = vmatpush1.msra.mxu0 0.0
  %1584 = vmatprep.subr.mxu0 0.0
  %1585 = vmatpush1.msra.mxu0 0.0
  %1586 = vmatprep.subr.mxu0 0.0
  %1587 = vmatpush1.msra.mxu0 0.0
  %1588 = vmatprep.subr.mxu0 0.0
  %1589 = vmatpush1.msra.mxu0 0.0
  %1590 = vmatprep.subr.mxu0 0.0
  %1591 = vmatpush1.msra.mxu0 0.0
  %1592 = vmatprep.subr.mxu0 0.0
  %1593 = vmatpush1.msra.mxu0 0.0
  %1594 = vmatprep.subr.mxu0 0.0
  %1595 = vmatpush1.msra.mxu0 0.0
  %1596 = vmatprep.subr.mxu0 0.0
  %1597 = vmatpush1.msra.mxu0 0.0
  %1598 = vmatprep.subr.mxu0 0.0
  %1599 = vmatpush1.msra.mxu0 0.0
  %1600 = vmatprep.subr.mxu0 0.0
  %1601 = vmatpush1.msra.mxu0 0.0
  %1602 = vmatprep.subr.mxu0 0.0
  %1603 = vmatpush1.msra.mxu0 0.0
  %1604 = vmatprep.subr.mxu0 0.0
  %1605 = vmatpush1.msra.mxu0 0.0
  %1606 = vmatprep.subr.mxu0 0.0
  %1607 = vmatpush1.msra.mxu0 0.0
  %1608 = vmatprep.subr.mxu0 0.0
  %1609 = vmatpush1.msra.mxu0 0.0
  %1610 = vmatprep.subr.mxu0 0.0
  %1611 = vmatpush1.msra.mxu0 0.0
  %1612 = vmatprep.subr.mxu0 0.0
  %1613 = vmatpush1.msra.mxu0 0.0
  %1614 = vmatprep.subr.mxu0 0.0
  %1615 = vmatpush1.msra.mxu0 0.0
  %1616 = vmatprep.subr.mxu0 0.0
  %1617 = vmatpush1.msra.mxu0 0.0
  %1618 = vmatprep.subr.mxu0 0.0
  %1619 = vmatpush1.msra.mxu0 0.0
  %1620 = vmatprep.subr.mxu0 0.0
  %1621 = vmatpush1.msra.mxu0 0.0
  %1622 = vmatprep.mubr.f32.mxu0 0.0
  %1623 = vmatmul.mubr.f32.gmra.mrb[0].mxu0 %v1556
  %v1624 = vpop.f32.mrb[0].mxu0
  %v1625 = vadd.f32 0.0, %v1624
  %v1626 = vpop.f32.mrb[0].mxu0
  %1627 = vdwg.mxu0
  %v1629 = vrot.slane %v1625, 2
  %v1631 = vadd.f32 %v122, %v1629
  %v1632 = vtanh.pop %v1631
  %1633 = vmatprep.subr.mxu0 0.0
  %1634 = vmatpush1.msra.mxu0 %v13
  %1635 = vmatprep.subr.mxu0 0.0
  %1636 = vmatpush1.msra.mxu0 0.0
  %1637 = vmatprep.subr.mxu0 0.0
  %1638 = vmatpush1.msra.mxu0 0.0
  %1639 = vmatprep.subr.mxu0 0.0
  %1640 = vmatpush1.msra.mxu0 0.0
  %1641 = vmatprep.subr.mxu0 0.0
  %1642 = vmatpush1.msra.mxu0 0.0
  %1643 = vmatprep.subr.mxu0 0.0
  %1644 = vmatpush1.msra.mxu0 0.0
  %1645 = vmatprep.subr.mxu0 0.0
  %1646 = vmatpush1.msra.mxu0 0.0
  %1647 = vmatprep.subr.mxu0 0.0
  %1648 = vmatpush1.msra.mxu0 0.0
  %1649 = vmatprep.subr.mxu0 0.0
  %1650 = vmatpush1.msra.mxu0 0.0
  %1651 = vmatprep.subr.mxu0 0.0
  %1652 = vmatpush1.msra.mxu0 0.0
  %1653 = vmatprep.subr.mxu0 0.0
  %1654 = vmatpush1.msra.mxu0 0.0
  %1655 = vmatprep.subr.mxu0 0.0
  %1656 = vmatpush1.msra.mxu0 0.0
  %1657 = vmatprep.subr.mxu0 0.0
  %1658 = vmatpush1.msra.mxu0 0.0
  %1659 = vmatprep.subr.mxu0 0.0
  %1660 = vmatpush1.msra.mxu0 0.0
  %1661 = vmatprep.subr.mxu0 0.0
  %1662 = vmatpush1.msra.mxu0 0.0
  %1663 = vmatprep.subr.mxu0 0.0
  %1664 = vmatpush1.msra.mxu0 0.0
  %1665 = vmatprep.subr.mxu0 0.0
  %1666 = vmatpush1.msra.mxu0 0.0
  %1667 = vmatprep.subr.mxu0 0.0
  %1668 = vmatpush1.msra.mxu0 0.0
  %1669 = vmatprep.subr.mxu0 0.0
  %1670 = vmatpush1.msra.mxu0 0.0
  %1671 = vmatprep.subr.mxu0 0.0
  %1672 = vmatpush1.msra.mxu0 0.0
  %1673 = vmatprep.subr.mxu0 0.0
  %1674 = vmatpush1.msra.mxu0 0.0
  %1675 = vmatprep.subr.mxu0 0.0
  %1676 = vmatpush1.msra.mxu0 0.0
  %1677 = vmatprep.subr.mxu0 0.0
  %1678 = vmatpush1.msra.mxu0 0.0
  %1679 = vmatprep.subr.mxu0 0.0
  %1680 = vmatpush1.msra.mxu0 0.0
  %1681 = vmatprep.subr.mxu0 0.0
  %1682 = vmatpush1.msra.mxu0 0.0
  %1683 = vmatprep.subr.mxu0 0.0
  %1684 = vmatpush1.msra.mxu0 0.0
  %1685 = vmatprep.subr.mxu0 0.0
  %1686 = vmatpush1.msra.mxu0 0.0
  %1687 = vmatprep.subr.mxu0 0.0
  %1688 = vmatpush1.msra.mxu0 0.0
  %1689 = vmatprep.subr.mxu0 0.0
  %1690 = vmatpush1.msra.mxu0 0.0
  %1691 = vmatprep.subr.mxu0 0.0
  %1692 = vmatpush1.msra.mxu0 0.0
  %1693 = vmatprep.subr.mxu0 0.0
  %1694 = vmatpush1.msra.mxu0 0.0
  %1695 = vmatprep.subr.mxu0 0.0
  %1696 = vmatpush1.msra.mxu0 0.0
  %1697 = vmatprep.mubr.f32.mxu0 0.0
  %1698 = vmatmul.mubr.f32.gmra.mrb[0].mxu0 %v1556
  %v1699 = vpop.f32.mrb[0].mxu0
  %v1700 = vadd.f32 %v208, %v1699
  %v1701 = vpop.f32.mrb[0].mxu0
  %1702 = vdwg.mxu0
  %v1703 = vsel %vm126, %v1526, 0
  %1705 = vmatprep.subr.mxu0 0.0
  %1706 = vmatpush1.msra.mxu0 %v14
  %1707 = vmatprep.subr.mxu0 0.0
  %1708 = vmatpush1.msra.mxu0 0.0
  %1709 = vmatprep.subr.mxu0 0.0
  %1710 = vmatpush1.msra.mxu0 0.0
  %1711 = vmatprep.subr.mxu0 0.0
  %1712 = vmatpush1.msra.mxu0 0.0
  %1713 = vmatprep.subr.mxu0 0.0
  %1714 = vmatpush1.msra.mxu0 0.0
  %1715 = vmatprep.subr.mxu0 0.0
  %1716 = vmatpush1.msra.mxu0 0.0
  %1717 = vmatprep.subr.mxu0 0.0
  %1718 = vmatpush1.msra.mxu0 0.0
  %1719 = vmatprep.subr.mxu0 0.0
  %1720 = vmatpush1.msra.mxu0 0.0
  %1721 = vmatprep.subr.mxu0 0.0
  %1722 = vmatpush1.msra.mxu0 0.0
  %1723 = vmatprep.subr.mxu0 0.0
  %1724 = vmatpush1.msra.mxu0 0.0
  %1725 = vmatprep.subr.mxu0 0.0
  %1726 = vmatpush1.msra.mxu0 0.0
  %1727 = vmatprep.subr.mxu0 0.0
  %1728 = vmatpush1.msra.mxu0 0.0
  %1729 = vmatprep.subr.mxu0 0.0
  %1730 = vmatpush1.msra.mxu0 0.0
  %1731 = vmatprep.subr.mxu0 0.0
  %1732 = vmatpush1.msra.mxu0 0.0
  %1733 = vmatprep.subr.mxu0 0.0
  %1734 = vmatpush1.msra.mxu0 0.0
  %1735 = vmatprep.subr.mxu0 0.0
  %1736 = vmatpush1.msra.mxu0 0.0
  %1737 = vmatprep.subr.mxu0 0.0
  %1738 = vmatpush1.msra.mxu0 0.0
  %1739 = vmatprep.subr.mxu0 0.0
  %1740 = vmatpush1.msra.mxu0 0.0
  %1741 = vmatprep.subr.mxu0 0.0
  %1742 = vmatpush1.msra.mxu0 0.0
  %1743 = vmatprep.subr.mxu0 0.0
  %1744 = vmatpush1.msra.mxu0 0.0
  %1745 = vmatprep.subr.mxu0 0.0
  %1746 = vmatpush1.msra.mxu0 0.0
  %1747 = vmatprep.subr.mxu0 0.0
  %1748 = vmatpush1.msra.mxu0 0.0
  %1749 = vmatprep.subr.mxu0 0.0
  %1750 = vmatpush1.msra.mxu0 0.0
  %1751 = vmatprep.subr.mxu0 0.0
  %1752 = vmatpush1.msra.mxu0 0.0
  %1753 = vmatprep.subr.mxu0 0.0
  %1754 = vmatpush1.msra.mxu0 0.0
  %1755 = vmatprep.subr.mxu0 0.0
  %1756 = vmatpush1.msra.mxu0 0.0
  %1757 = vmatprep.subr.mxu0 0.0
  %1758 = vmatpush1.msra.mxu0 0.0
  %1759 = vmatprep.subr.mxu0 0.0
  %1760 = vmatpush1.msra.mxu0 0.0
  %1761 = vmatprep.subr.mxu0 0.0
  %1762 = vmatpush1.msra.mxu0 0.0
  %1763 = vmatprep.subr.mxu0 0.0
  %1764 = vmatpush1.msra.mxu0 0.0
  %1765 = vmatprep.subr.mxu0 0.0
  %1766 = vmatpush1.msra.mxu0 0.0
  %1767 = vmatprep.subr.mxu0 0.0
  %1768 = vmatpush1.msra.mxu0 0.0
  %1769 = vmatprep.mubr.f32.mxu0 0.0
  %1770 = vmatmul.mubr.f32.gmra.mrb[0].mxu0 %v1703
  %v1771 = vpop.f32.mrb[0].mxu0
  %v1772 = vadd.f32 0.0, %v1771
  %v1773 = vpop.f32.mrb[0].mxu0
  %1774 = vdwg.mxu0
  %v1775 = vadd.f32 %v1700, %v1772
  %v1776 = vtanh.pop %v1775
  %v1779 = vunpack.c.l.s4 1966171168
  %v1780 = vunpack.c.0.s8 %v1779
  %v1781 = vlaneseq
  %v1782 = vshrl.u32 %v1781, 7
  %v1783 = vsub.s32 %v1780, %v1782
  %v1784 = vrot.slane %v1776, %v1783
  %v1785 = vcombine.high %v1784, %v1784
  %v1787 = vunpack.c.l.s4 1966171168
  %v1788 = vunpack.c.0.s8 %v1787
  %v1789 = vlaneseq
  %v1790 = vshrl.u32 %v1789, 7
  %v1791 = vsub.s32 %v1788, %v1790
  %v1792 = vrot.slane %v1784, %v1791
  %v1794 = vunpack.c.l.s4 1966171168
  %v1795 = vunpack.c.0.s8 %v1794
  %v1796 = vlaneseq
  %v1797 = vshrl.u32 %v1796, 7
  %v1798 = vsub.s32 %v1795, %v1797
  %v1799 = vrot.slane %v1785, %v1798
  %1802 = vst.msk [vmem:[#allocation2 + $0x6] sm:$0x1] %vm305, %v1792
  %1803 = vst.msk [vmem:[#allocation2 + $0xe] sm:$0x1] %vm305, %v1799
  %v1805 = vrot.slane %v1632, 6
  %v1806 = vsel %vm126, %v1805, 0
  %1808 = vmatprep.subr.mxu0 0.0
  %1809 = vmatpush1.msra.mxu0 %v13
  %1810 = vmatprep.subr.mxu0 0.0
  %1811 = vmatpush1.msra.mxu0 0.0
  %1812 = vmatprep.subr.mxu0 0.0
  %1813 = vmatpush1.msra.mxu0 0.0
  %1814 = vmatprep.subr.mxu0 0.0
  %1815 = vmatpush1.msra.mxu0 0.0
  %1816 = vmatprep.subr.mxu0 0.0
  %1817 = vmatpush1.msra.mxu0 0.0
  %1818 = vmatprep.subr.mxu0 0.0
  %1819 = vmatpush1.msra.mxu0 0.0
  %1820 = vmatprep.subr.mxu0 0.0
  %1821 = vmatpush1.msra.mxu0 0.0
  %1822 = vmatprep.subr.mxu0 0.0
  %1823 = vmatpush1.msra.mxu0 0.0
  %1824 = vmatprep.subr.mxu0 0.0
  %1825 = vmatpush1.msra.mxu0 0.0
  %1826 = vmatprep.subr.mxu0 0.0
  %1827 = vmatpush1.msra.mxu0 0.0
  %1828 = vmatprep.subr.mxu0 0.0
  %1829 = vmatpush1.msra.mxu0 0.0
  %1830 = vmatprep.subr.mxu0 0.0
  %1831 = vmatpush1.msra.mxu0 0.0
  %1832 = vmatprep.subr.mxu0 0.0
  %1833 = vmatpush1.msra.mxu0 0.0
  %1834 = vmatprep.subr.mxu0 0.0
  %1835 = vmatpush1.msra.mxu0 0.0
  %1836 = vmatprep.subr.mxu0 0.0
  %1837 = vmatpush1.msra.mxu0 0.0
  %1838 = vmatprep.subr.mxu0 0.0
  %1839 = vmatpush1.msra.mxu0 0.0
  %1840 = vmatprep.subr.mxu0 0.0
  %1841 = vmatpush1.msra.mxu0 0.0
  %1842 = vmatprep.subr.mxu0 0.0
  %1843 = vmatpush1.msra.mxu0 0.0
  %1844 = vmatprep.subr.mxu0 0.0
  %1845 = vmatpush1.msra.mxu0 0.0
  %1846 = vmatprep.subr.mxu0 0.0
  %1847 = vmatpush1.msra.mxu0 0.0
  %1848 = vmatprep.subr.mxu0 0.0
  %1849 = vmatpush1.msra.mxu0 0.0
  %1850 = vmatprep.subr.mxu0 0.0
  %1851 = vmatpush1.msra.mxu0 0.0
  %1852 = vmatprep.subr.mxu0 0.0
  %1853 = vmatpush1.msra.mxu0 0.0
  %1854 = vmatprep.subr.mxu0 0.0
  %1855 = vmatpush1.msra.mxu0 0.0
  %1856 = vmatprep.subr.mxu0 0.0
  %1857 = vmatpush1.msra.mxu0 0.0
  %1858 = vmatprep.subr.mxu0 0.0
  %1859 = vmatpush1.msra.mxu0 0.0
  %1860 = vmatprep.subr.mxu0 0.0
  %1861 = vmatpush1.msra.mxu0 0.0
  %1862 = vmatprep.subr.mxu0 0.0
  %1863 = vmatpush1.msra.mxu0 0.0
  %1864 = vmatprep.subr.mxu0 0.0
  %1865 = vmatpush1.msra.mxu0 0.0
  %1866 = vmatprep.subr.mxu0 0.0
  %1867 = vmatpush1.msra.mxu0 0.0
  %1868 = vmatprep.subr.mxu0 0.0
  %1869 = vmatpush1.msra.mxu0 0.0
  %1870 = vmatprep.subr.mxu0 0.0
  %1871 = vmatpush1.msra.mxu0 0.0
  %1872 = vmatprep.mubr.f32.mxu0 0.0
  %1873 = vmatmul.mubr.f32.gmra.mrb[0].mxu0 %v1806
  %v1874 = vpop.f32.mrb[0].mxu0
  %v1875 = vadd.f32 %v208, %v1874
  %v1876 = vpop.f32.mrb[0].mxu0
  %1877 = vdwg.mxu0
  %v1878 = vsel %vm126, %v1776, 0
  %1880 = vmatprep.subr.mxu0 0.0
  %1881 = vmatpush1.msra.mxu0 %v14
  %1882 = vmatprep.subr.mxu0 0.0
  %1883 = vmatpush1.msra.mxu0 0.0
  %1884 = vmatprep.subr.mxu0 0.0
  %1885 = vmatpush1.msra.mxu0 0.0
  %1886 = vmatprep.subr.mxu0 0.0
  %1887 = vmatpush1.msra.mxu0 0.0
  %1888 = vmatprep.subr.mxu0 0.0
  %1889 = vmatpush1.msra.mxu0 0.0
  %1890 = vmatprep.subr.mxu0 0.0
  %1891 = vmatpush1.msra.mxu0 0.0
  %1892 = vmatprep.subr.mxu0 0.0
  %1893 = vmatpush1.msra.mxu0 0.0
  %1894 = vmatprep.subr.mxu0 0.0
  %1895 = vmatpush1.msra.mxu0 0.0
  %1896 = vmatprep.subr.mxu0 0.0
  %1897 = vmatpush1.msra.mxu0 0.0
  %1898 = vmatprep.subr.mxu0 0.0
  %1899 = vmatpush1.msra.mxu0 0.0
  %1900 = vmatprep.subr.mxu0 0.0
  %1901 = vmatpush1.msra.mxu0 0.0
  %1902 = vmatprep.subr.mxu0 0.0
  %1903 = vmatpush1.msra.mxu0 0.0
  %1904 = vmatprep.subr.mxu0 0.0
  %1905 = vmatpush1.msra.mxu0 0.0
  %1906 = vmatprep.subr.mxu0 0.0
  %1907 = vmatpush1.msra.mxu0 0.0
  %1908 = vmatprep.subr.mxu0 0.0
  %1909 = vmatpush1.msra.mxu0 0.0
  %1910 = vmatprep.subr.mxu0 0.0
  %1911 = vmatpush1.msra.mxu0 0.0
  %1912 = vmatprep.subr.mxu0 0.0
  %1913 = vmatpush1.msra.mxu0 0.0
  %1914 = vmatprep.subr.mxu0 0.0
  %1915 = vmatpush1.msra.mxu0 0.0
  %1916 = vmatprep.subr.mxu0 0.0
  %1917 = vmatpush1.msra.mxu0 0.0
  %1918 = vmatprep.subr.mxu0 0.0
  %1919 = vmatpush1.msra.mxu0 0.0
  %1920 = vmatprep.subr.mxu0 0.0
  %1921 = vmatpush1.msra.mxu0 0.0
  %1922 = vmatprep.subr.mxu0 0.0
  %1923 = vmatpush1.msra.mxu0 0.0
  %1924 = vmatprep.subr.mxu0 0.0
  %1925 = vmatpush1.msra.mxu0 0.0
  %1926 = vmatprep.subr.mxu0 0.0
  %1927 = vmatpush1.msra.mxu0 0.0
  %1928 = vmatprep.subr.mxu0 0.0
  %1929 = vmatpush1.msra.mxu0 0.0
  %1930 = vmatprep.subr.mxu0 0.0
  %1931 = vmatpush1.msra.mxu0 0.0
  %1932 = vmatprep.subr.mxu0 0.0
  %1933 = vmatpush1.msra.mxu0 0.0
  %1934 = vmatprep.subr.mxu0 0.0
  %1935 = vmatpush1.msra.mxu0 0.0
  %1936 = vmatprep.subr.mxu0 0.0
  %1937 = vmatpush1.msra.mxu0 0.0
  %1938 = vmatprep.subr.mxu0 0.0
  %1939 = vmatpush1.msra.mxu0 0.0
  %1940 = vmatprep.subr.mxu0 0.0
  %1941 = vmatpush1.msra.mxu0 0.0
  %1942 = vmatprep.subr.mxu0 0.0
  %1943 = vmatpush1.msra.mxu0 0.0
  %1944 = vmatprep.mubr.f32.mxu0 0.0
  %1945 = vmatmul.mubr.f32.gmra.mrb[0].mxu0 %v1878
  %v1946 = vpop.f32.mrb[0].mxu0
  %v1947 = vadd.f32 0.0, %v1946
  %v1948 = vpop.f32.mrb[0].mxu0
  %1949 = vdwg.mxu0
  %v1950 = vadd.f32 %v1875, %v1947
  %v1951 = vtanh.pop %v1950
  %v1954 = vunpack.c.l.s4 1966171168
  %v1955 = vunpack.c.0.s8 %v1954
  %v1956 = vlaneseq
  %v1957 = vshrl.u32 %v1956, 7
  %v1958 = vsub.s32 %v1955, %v1957
  %v1959 = vrot.slane %v1951, %v1958
  %v1960 = vcombine.high %v1959, %v1959
  %v1962 = vunpack.c.l.s4 1966171168
  %v1963 = vunpack.c.0.s8 %v1962
  %v1964 = vlaneseq
  %v1965 = vshrl.u32 %v1964, 7
  %v1966 = vsub.s32 %v1963, %v1965
  %v1967 = vrot.slane %v1959, %v1966
  %v1969 = vunpack.c.l.s4 1966171168
  %v1970 = vunpack.c.0.s8 %v1969
  %v1971 = vlaneseq
  %v1972 = vshrl.u32 %v1971, 7
  %v1973 = vsub.s32 %v1970, %v1972
  %v1974 = vrot.slane %v1960, %v1973
  %1977 = vst.msk [vmem:[#allocation2 + $0x7] sm:$0x1] %vm305, %v1967
  %1978 = vst.msk [vmem:[#allocation2 + $0xf] sm:$0x1] %vm305, %v1974
  %v1979 = vld [vmem:[#allocation2] sm:$0xff]
  %v1980 = vld [vmem:[#allocation2 + $0x8] sm:$0xff]
  %v1981 = vlaneseq
  %v1982 = vshrl.u32 %v1981, 7
  %v1983 = vsub.s32 0, %v1982
  %v1984 = vrot.slane %v18, %v1983
  %v1986 = vsel %vm126, %v1979, 0
  %v1989 = vsel %vm126, %v1980, 0
  %1991 = vmatprep.subr.mxu0 0.0
  %1992 = vmatpush1.msra.mxu0 %v15
  %1993 = vmatprep.subr.mxu0 0.0
  %1994 = vmatpush1.msra.mxu0 0.0
  %1995 = vmatprep.subr.mxu0 0.0
  %1996 = vmatpush1.msra.mxu0 0.0
  %1997 = vmatprep.subr.mxu0 0.0
  %1998 = vmatpush1.msra.mxu0 0.0
  %1999 = vmatprep.subr.mxu0 0.0
  %2000 = vmatpush1.msra.mxu0 0.0
  %2001 = vmatprep.subr.mxu0 0.0
  %2002 = vmatpush1.msra.mxu0 0.0
  %2003 = vmatprep.subr.mxu0 0.0
  %2004 = vmatpush1.msra.mxu0 0.0
  %2005 = vmatprep.subr.mxu0 0.0
  %2006 = vmatpush1.msra.mxu0 0.0
  %2007 = vmatprep.subr.mxu0 0.0
  %2008 = vmatpush1.msra.mxu0 0.0
  %2009 = vmatprep.subr.mxu0 0.0
  %2010 = vmatpush1.msra.mxu0 0.0
  %2011 = vmatprep.subr.mxu0 0.0
  %2012 = vmatpush1.msra.mxu0 0.0
  %2013 = vmatprep.subr.mxu0 0.0
  %2014 = vmatpush1.msra.mxu0 0.0
  %2015 = vmatprep.subr.mxu0 0.0
  %2016 = vmatpush1.msra.mxu0 0.0
  %2017 = vmatprep.subr.mxu0 0.0
  %2018 = vmatpush1.msra.mxu0 0.0
  %2019 = vmatprep.subr.mxu0 0.0
  %2020 = vmatpush1.msra.mxu0 0.0
  %2021 = vmatprep.subr.mxu0 0.0
  %2022 = vmatpush1.msra.mxu0 0.0
  %2023 = vmatprep.subr.mxu0 0.0
  %2024 = vmatpush1.msra.mxu0 0.0
  %2025 = vmatprep.subr.mxu0 0.0
  %2026 = vmatpush1.msra.mxu0 0.0
  %2027 = vmatprep.subr.mxu0 0.0
  %2028 = vmatpush1.msra.mxu0 0.0
  %2029 = vmatprep.subr.mxu0 0.0
  %2030 = vmatpush1.msra.mxu0 0.0
  %2031 = vmatprep.subr.mxu0 0.0
  %2032 = vmatpush1.msra.mxu0 0.0
  %2033 = vmatprep.subr.mxu0 0.0
  %2034 = vmatpush1.msra.mxu0 0.0
  %2035 = vmatprep.subr.mxu0 0.0
  %2036 = vmatpush1.msra.mxu0 0.0
  %2037 = vmatprep.subr.mxu0 0.0
  %2038 = vmatpush1.msra.mxu0 0.0
  %2039 = vmatprep.subr.mxu0 0.0
  %2040 = vmatpush1.msra.mxu0 0.0
  %2041 = vmatprep.subr.mxu0 0.0
  %2042 = vmatpush1.msra.mxu0 0.0
  %2043 = vmatprep.subr.mxu0 0.0
  %2044 = vmatpush1.msra.mxu0 0.0
  %2045 = vmatprep.subr.mxu0 0.0
  %2046 = vmatpush1.msra.mxu0 0.0
  %2047 = vmatprep.subr.mxu0 0.0
  %2048 = vmatpush1.msra.mxu0 0.0
  %2049 = vmatprep.subr.mxu0 0.0
  %2050 = vmatpush1.msra.mxu0 0.0
  %2051 = vmatprep.subr.mxu0 0.0
  %2052 = vmatpush1.msra.mxu0 0.0
  %2053 = vmatprep.subr.mxu0 0.0
  %2054 = vmatpush1.msra.mxu0 0.0
  %2055 = vmatprep.mubr.f32.mxu0 0.0
  %2056 = vmatmul.mubr.f32.gmra.mrb[0].mxu0 %v1986
  %v2057 = vpop.f32.mrb[0].mxu0
  %v2058 = vadd.f32 %v1984, %v2057
  %v2059 = vpop.f32.mrb[0].mxu0
  %2060 = vmatprep.mubr.f32.mxu0 0.0
  %2061 = vmatmul.mubr.f32.gmra.mrb[0].mxu0 %v1989
  %v2062 = vpop.f32.mrb[0].mxu0
  %v2063 = vadd.f32 %v1984, %v2062
  %v2064 = vpop.f32.mrb[0].mxu0
  %2065 = vdwg.mxu0
  %2066 = vst.msk [vmem:[%s2] sm:$0xff] %vm39, %v2058
  %2067 = vst.msk [vmem:[%s2 + $0x8] sm:$0xff] %vm39, %v2063
  // Predicated region
  $region10: #{tpu_custom_call.1} parent=0 // pred_check
    _
  $region11: #{tpu_custom_call.1} parent=0 // pred_check_branch
    %2069 = sbr.rel (0) target = $region13
  $region12: #{tpu_custom_call.1} parent=0 // pred_region
    _
  $region13: #{tpu_custom_call.1} parent=0 // pred_fallthru
    _
  // Predicated region
  $region14: #{tpu_custom_call.1} parent=0 // pred_check
    _
  $region15: #{tpu_custom_call.1} parent=0 // pred_check_branch
    %2071 = sbr.rel (0) target = $region17
  $region16: #{tpu_custom_call.1} parent=0 // pred_region
    _
  $region17: #{tpu_custom_call.1} parent=0 // pred_fallthru
    _

</llo_original>
